<compile_context>
chip_gen: v6e
topology: v6e:2x2x1
jax: 0.10.0
libtpu: 0.0.40
codegen_flags: <defaults>
</compile_context>

<pallas_src>
import jax
import jax.numpy as jnp
from jax.experimental import pallas as pl
from jax.experimental.pallas import tpu as pltpu


def _make_seq2seq_kernel(t_enc, t_dec, bp):
    """Builds the kernel with static T_enc / T_dec / padded batch size."""

    def kernel(x_ref, h0_ref, w_ref, b_ref, out_ref, hs_ref):
        # ---- unpack packed weight / bias slabs (static slices: views) ----
        e_wi = w_ref[0]            # [P, P]  encoder W_ih^T (zero-padded)
        d_wi = w_ref[1]            # decoder W_ih^T
        e_wh = w_ref[2]            # encoder W_hh^T
        d_wh = w_ref[3]            # decoder W_hh^T
        fc_w = w_ref[4]            # fc W^T
        e_b = b_ref[0:1, :]        # [1, P]  enc (b_ih + b_hh)
        d_b = b_ref[1:2, :]        # dec (b_ih + b_hh)
        fc_b = b_ref[2:3, :]       # fc bias

        # ---- batched input projections for ALL timesteps (one MXU pass each)
        enc_xp = jnp.dot(x_ref[0:t_enc * bp, :], e_wi,
                         preferred_element_type=jnp.float32) + e_b
        dec_xp = jnp.dot(x_ref[t_enc * bp:(t_enc + t_dec) * bp, :], d_wi,
                         preferred_element_type=jnp.float32) + d_b

        # ---- encoder recurrence (fully unrolled; only h@W_hh is serial) ----
        h = h0_ref[...]                                       # [Bp, P]
        for t in range(t_enc):
            h = jnp.tanh(
                jnp.dot(h, e_wh, preferred_element_type=jnp.float32)
                + enc_xp[t * bp:(t + 1) * bp, :])

        # ---- decoder recurrence; hidden states into aligned VMEM scratch ----
        for t in range(t_dec):
            h = jnp.tanh(
                jnp.dot(h, d_wh, preferred_element_type=jnp.float32)
                + dec_xp[t * bp:(t + 1) * bp, :])
            hs_ref[t * bp:(t + 1) * bp, :] = h

        # ---- hoisted FC: one batched matmul + one contiguous, unmasked store
        out_ref[...] = (jnp.dot(hs_ref[...], fc_w,
                                preferred_element_type=jnp.float32)
                        + fc_b).astype(out_ref.dtype)

    return kernel


def _round_up(x, m):
    return -(-x // m) * m


def seq2seq_forward(enc_input, dec_input, enc_hidden, params):
    """enc_input: [B, T_enc, C], dec_input: [B, T_dec, C], enc_hidden: [1, B, H].
    Returns [T_dec, B, C] (same as the PyTorch module)."""
    B, T_enc, C = enc_input.shape
    _, T_dec, _ = dec_input.shape
    H = enc_hidden.shape[-1]

    Bp = _round_up(max(B, 8), 8)        # full sublane group per timestep
    P = _round_up(max(C, H), 128)       # shared lane-dense pad for C and H

    def pad2(a, rows, cols):
        return jnp.pad(a, ((0, rows - a.shape[0]), (0, cols - a.shape[1])))

    # time-major, batch/class zero-padded, flattened to 2-D, enc+dec stacked
    enc_tm = jnp.pad(jnp.transpose(enc_input, (1, 0, 2)),
                     ((0, 0), (0, Bp - B), (0, P - C))).reshape(T_enc * Bp, P)
    dec_tm = jnp.pad(jnp.transpose(dec_input, (1, 0, 2)),
                     ((0, 0), (0, Bp - B), (0, P - C))).reshape(T_dec * Bp, P)
    x = jnp.concatenate([enc_tm, dec_tm], axis=0)            # [(Te+Td)*Bp, P]

    h0 = pad2(enc_hidden[0], Bp, P)                           # [Bp, P]

    # one packed weight slab [5, P, P] (all pre-transposed, zero-padded)
    w = jnp.stack([
        pad2(params["enc_w_ih"].T, P, P),
        pad2(params["dec_w_ih"].T, P, P),
        pad2(params["enc_w_hh"].T, P, P),
        pad2(params["dec_w_hh"].T, P, P),
        pad2(params["fc_w"].T, P, P),
    ], axis=0)

    # one packed bias slab [3, P]: enc(b_ih+b_hh), dec(b_ih+b_hh), fc_b
    b = jnp.stack([
        jnp.pad(params["enc_b_ih"] + params["enc_b_hh"], (0, P - H)),
        jnp.pad(params["dec_b_ih"] + params["dec_b_hh"], (0, P - H)),
        jnp.pad(params["fc_b"], (0, P - C)),
    ], axis=0)

    kernel = _make_seq2seq_kernel(T_enc, T_dec, Bp)
    vmem = pltpu.MemorySpace.VMEM

    # grid-less call: kernel body runs once, all operands whole-array in VMEM
    out_padded = pl.pallas_call(
        kernel,
        out_shape=jax.ShapeDtypeStruct((T_dec * Bp, P), jnp.float32),
        in_specs=[pl.BlockSpec(memory_space=vmem)] * 4,
        out_specs=pl.BlockSpec(memory_space=vmem),
        scratch_shapes=[pltpu.VMEM((T_dec * Bp, P), jnp.float32)],
    )(x, h0, w, b)

    # [T_dec*Bp, P] -> [T_dec, Bp, P] -> slice valid region -> [T_dec, B, C]
    return out_padded.reshape(T_dec, Bp, P)[:, :B, :C]


def _reference_forward(enc_input, dec_input, enc_hidden, params):
    """Pure-JAX reference matching nn.RNN/nn.Linear semantics."""
    enc_x = jnp.transpose(enc_input, (1, 0, 2))
    dec_x = jnp.transpose(dec_input, (1, 0, 2))
    h = enc_hidden[0]

    def rnn_step(h, x, w_ih, w_hh, b_ih, b_hh):
        return jnp.tanh(x @ w_ih.T + b_ih + h @ w_hh.T + b_hh)

    for t in range(enc_x.shape[0]):
        h = rnn_step(h, enc_x[t], params["enc_w_ih"], params["enc_w_hh"],
                     params["enc_b_ih"], params["enc_b_hh"])
    outs = []
    for t in range(dec_x.shape[0]):
        h = rnn_step(h, dec_x[t], params["dec_w_ih"], params["dec_w_hh"],
                     params["dec_b_ih"], params["dec_b_hh"])
        outs.append(h @ params["fc_w"].T + params["fc_b"])
    return jnp.stack(outs, axis=0)


if __name__ == "__main__":
    # small, deterministic shapes
    B, T_enc, T_dec = 2, 8, 8
    n_class, n_hidden = 32, 32

    key = jax.random.PRNGKey(0)
    keys = jax.random.split(key, 16)
    bound = 1.0 / jnp.sqrt(n_hidden)

    def u(k, shape):
        return jax.random.uniform(k, shape, jnp.float32, -bound, bound)

    params = {
        "enc_w_ih": u(keys[0], (n_hidden, n_class)),
        "enc_w_hh": u(keys[1], (n_hidden, n_hidden)),
        "enc_b_ih": u(keys[2], (n_hidden,)),
        "enc_b_hh": u(keys[3], (n_hidden,)),
        "dec_w_ih": u(keys[4], (n_hidden, n_class)),
        "dec_w_hh": u(keys[5], (n_hidden, n_hidden)),
        "dec_b_ih": u(keys[6], (n_hidden,)),
        "dec_b_hh": u(keys[7], (n_hidden,)),
        "fc_w": u(keys[8], (n_class, n_hidden)),
        "fc_b": u(keys[9], (n_class,)),
    }

    enc_input = jax.random.normal(keys[10], (B, T_enc, n_class), jnp.float32)
    dec_input = jax.random.normal(keys[11], (B, T_dec, n_class), jnp.float32)
    enc_hidden = jnp.zeros((1, B, n_hidden), jnp.float32)

    out = seq2seq_forward(enc_input, dec_input, enc_hidden, params)
    out = jax.block_until_ready(out)

    ref = _reference_forward(enc_input, dec_input, enc_hidden, params)
    assert out.shape == (T_dec, B, n_class)
    assert jnp.allclose(out, ref, atol=1e-5, rtol=1e-5)

    print("KERNEL_OK")
</pallas_src>

<mosaic_0001>
module attributes {stable_mosaic.version = 11 : i64} {
  func.func @kernel(%arg0: memref<128x128xf32, #tpu.memory_space<vmem>>, %arg1: memref<8x128xf32, #tpu.memory_space<vmem>>, %arg2: memref<5x128x128xf32, #tpu.memory_space<vmem>>, %arg3: memref<3x128xf32, #tpu.memory_space<vmem>>, %arg4: memref<64x128xf32, #tpu.memory_space<vmem>>, %arg5: memref<64x128xf32, #tpu.memory_space<vmem>>) attributes {dimension_semantics = [], scalar_prefetch = 0 : i64, scratch_operands = 1 : i64, tpu.core_type = #tpu.core_type<tc>} {
    %c0 = arith.constant 0 : index
    %c0_0 = arith.constant 0 : index
    %c0_1 = arith.constant 0 : index
    %0 = vector.load %arg2[%c0, %c0_0, %c0_1] : memref<5x128x128xf32, #tpu.memory_space<vmem>>, vector<1x128x128xf32>
    %1 = vector.shape_cast %0 : vector<1x128x128xf32> to vector<128x128xf32>
    %c1 = arith.constant 1 : index
    %c0_2 = arith.constant 0 : index
    %c0_3 = arith.constant 0 : index
    %2 = vector.load %arg2[%c1, %c0_2, %c0_3] : memref<5x128x128xf32, #tpu.memory_space<vmem>>, vector<1x128x128xf32>
    %3 = vector.shape_cast %2 : vector<1x128x128xf32> to vector<128x128xf32>
    %c2 = arith.constant 2 : index
    %c0_4 = arith.constant 0 : index
    %c0_5 = arith.constant 0 : index
    %4 = vector.load %arg2[%c2, %c0_4, %c0_5] : memref<5x128x128xf32, #tpu.memory_space<vmem>>, vector<1x128x128xf32>
    %5 = vector.shape_cast %4 : vector<1x128x128xf32> to vector<128x128xf32>
    %c3 = arith.constant 3 : index
    %c0_6 = arith.constant 0 : index
    %c0_7 = arith.constant 0 : index
    %6 = vector.load %arg2[%c3, %c0_6, %c0_7] : memref<5x128x128xf32, #tpu.memory_space<vmem>>, vector<1x128x128xf32>
    %7 = vector.shape_cast %6 : vector<1x128x128xf32> to vector<128x128xf32>
    %c4 = arith.constant 4 : index
    %c0_8 = arith.constant 0 : index
    %c0_9 = arith.constant 0 : index
    %8 = vector.load %arg2[%c4, %c0_8, %c0_9] : memref<5x128x128xf32, #tpu.memory_space<vmem>>, vector<1x128x128xf32>
    %9 = vector.shape_cast %8 : vector<1x128x128xf32> to vector<128x128xf32>
    %c0_10 = arith.constant 0 : index
    %c0_11 = arith.constant 0 : index
    %10 = vector.load %arg3[%c0_10, %c0_11] : memref<3x128xf32, #tpu.memory_space<vmem>>, vector<1x128xf32>
    %c1_12 = arith.constant 1 : index
    %c0_13 = arith.constant 0 : index
    %11 = vector.load %arg3[%c1_12, %c0_13] : memref<3x128xf32, #tpu.memory_space<vmem>>, vector<1x128xf32>
    %c2_14 = arith.constant 2 : index
    %c0_15 = arith.constant 0 : index
    %12 = vector.load %arg3[%c2_14, %c0_15] : memref<3x128xf32, #tpu.memory_space<vmem>>, vector<1x128xf32>
    %c0_16 = arith.constant 0 : index
    %c0_17 = arith.constant 0 : index
    %13 = vector.load %arg0[%c0_16, %c0_17] : memref<128x128xf32, #tpu.memory_space<vmem>>, vector<64x128xf32>
    %cst = arith.constant dense<0.000000e+00> : vector<64x128xf32>
    %14 = tpu.matmul %13, %1, %cst {dimension_numbers = #tpu.dot_dimension_numbers<[1], [0], [0], [1], [0, 0, 1, 1], [], []>} : vector<64x128xf32>, vector<128x128xf32>, vector<64x128xf32> -> vector<64x128xf32>
    %15 = vector.broadcast %10 : vector<1x128xf32> to vector<64x128xf32>
    %16 = arith.addf %14, %15 : vector<64x128xf32>
    %c64 = arith.constant 64 : index
    %c0_18 = arith.constant 0 : index
    %17 = vector.load %arg0[%c64, %c0_18] : memref<128x128xf32, #tpu.memory_space<vmem>>, vector<64x128xf32>
    %cst_19 = arith.constant dense<0.000000e+00> : vector<64x128xf32>
    %18 = tpu.matmul %17, %3, %cst_19 {dimension_numbers = #tpu.dot_dimension_numbers<[1], [0], [0], [1], [0, 0, 1, 1], [], []>} : vector<64x128xf32>, vector<128x128xf32>, vector<64x128xf32> -> vector<64x128xf32>
    %19 = vector.broadcast %11 : vector<1x128xf32> to vector<64x128xf32>
    %20 = arith.addf %18, %19 : vector<64x128xf32>
    %c0_20 = arith.constant 0 : index
    %c0_21 = arith.constant 0 : index
    %21 = vector.load %arg1[%c0_20, %c0_21] : memref<8x128xf32, #tpu.memory_space<vmem>>, vector<8x128xf32>
    %cst_22 = arith.constant dense<0.000000e+00> : vector<8x128xf32>
    %22 = tpu.matmul %21, %5, %cst_22 {dimension_numbers = #tpu.dot_dimension_numbers<[1], [0], [0], [1], [0, 0, 1, 1], [], []>} : vector<8x128xf32>, vector<128x128xf32>, vector<8x128xf32> -> vector<8x128xf32>
    %23 = vector.extract_strided_slice %16 {offsets = [0, 0], sizes = [8, 128], strides = [1, 1]} : vector<64x128xf32> to vector<8x128xf32>
    %24 = arith.addf %22, %23 : vector<8x128xf32>
    %25 = math.tanh %24 : vector<8x128xf32>
    %cst_23 = arith.constant dense<0.000000e+00> : vector<8x128xf32>
    %26 = tpu.matmul %25, %5, %cst_23 {dimension_numbers = #tpu.dot_dimension_numbers<[1], [0], [0], [1], [0, 0, 1, 1], [], []>} : vector<8x128xf32>, vector<128x128xf32>, vector<8x128xf32> -> vector<8x128xf32>
    %27 = vector.extract_strided_slice %16 {offsets = [8, 0], sizes = [8, 128], strides = [1, 1]} : vector<64x128xf32> to vector<8x128xf32>
    %28 = arith.addf %26, %27 : vector<8x128xf32>
    %29 = math.tanh %28 : vector<8x128xf32>
    %cst_24 = arith.constant dense<0.000000e+00> : vector<8x128xf32>
    %30 = tpu.matmul %29, %5, %cst_24 {dimension_numbers = #tpu.dot_dimension_numbers<[1], [0], [0], [1], [0, 0, 1, 1], [], []>} : vector<8x128xf32>, vector<128x128xf32>, vector<8x128xf32> -> vector<8x128xf32>
    %31 = vector.extract_strided_slice %16 {offsets = [16, 0], sizes = [8, 128], strides = [1, 1]} : vector<64x128xf32> to vector<8x128xf32>
    %32 = arith.addf %30, %31 : vector<8x128xf32>
    %33 = math.tanh %32 : vector<8x128xf32>
    %cst_25 = arith.constant dense<0.000000e+00> : vector<8x128xf32>
    %34 = tpu.matmul %33, %5, %cst_25 {dimension_numbers = #tpu.dot_dimension_numbers<[1], [0], [0], [1], [0, 0, 1, 1], [], []>} : vector<8x128xf32>, vector<128x128xf32>, vector<8x128xf32> -> vector<8x128xf32>
    %35 = vector.extract_strided_slice %16 {offsets = [24, 0], sizes = [8, 128], strides = [1, 1]} : vector<64x128xf32> to vector<8x128xf32>
    %36 = arith.addf %34, %35 : vector<8x128xf32>
    %37 = math.tanh %36 : vector<8x128xf32>
    %cst_26 = arith.constant dense<0.000000e+00> : vector<8x128xf32>
    %38 = tpu.matmul %37, %5, %cst_26 {dimension_numbers = #tpu.dot_dimension_numbers<[1], [0], [0], [1], [0, 0, 1, 1], [], []>} : vector<8x128xf32>, vector<128x128xf32>, vector<8x128xf32> -> vector<8x128xf32>
    %39 = vector.extract_strided_slice %16 {offsets = [32, 0], sizes = [8, 128], strides = [1, 1]} : vector<64x128xf32> to vector<8x128xf32>
    %40 = arith.addf %38, %39 : vector<8x128xf32>
    %41 = math.tanh %40 : vector<8x128xf32>
    %cst_27 = arith.constant dense<0.000000e+00> : vector<8x128xf32>
    %42 = tpu.matmul %41, %5, %cst_27 {dimension_numbers = #tpu.dot_dimension_numbers<[1], [0], [0], [1], [0, 0, 1, 1], [], []>} : vector<8x128xf32>, vector<128x128xf32>, vector<8x128xf32> -> vector<8x128xf32>
    %43 = vector.extract_strided_slice %16 {offsets = [40, 0], sizes = [8, 128], strides = [1, 1]} : vector<64x128xf32> to vector<8x128xf32>
    %44 = arith.addf %42, %43 : vector<8x128xf32>
    %45 = math.tanh %44 : vector<8x128xf32>
    %cst_28 = arith.constant dense<0.000000e+00> : vector<8x128xf32>
    %46 = tpu.matmul %45, %5, %cst_28 {dimension_numbers = #tpu.dot_dimension_numbers<[1], [0], [0], [1], [0, 0, 1, 1], [], []>} : vector<8x128xf32>, vector<128x128xf32>, vector<8x128xf32> -> vector<8x128xf32>
    %47 = vector.extract_strided_slice %16 {offsets = [48, 0], sizes = [8, 128], strides = [1, 1]} : vector<64x128xf32> to vector<8x128xf32>
    %48 = arith.addf %46, %47 : vector<8x128xf32>
    %49 = math.tanh %48 : vector<8x128xf32>
    %cst_29 = arith.constant dense<0.000000e+00> : vector<8x128xf32>
    %50 = tpu.matmul %49, %5, %cst_29 {dimension_numbers = #tpu.dot_dimension_numbers<[1], [0], [0], [1], [0, 0, 1, 1], [], []>} : vector<8x128xf32>, vector<128x128xf32>, vector<8x128xf32> -> vector<8x128xf32>
    %51 = vector.extract_strided_slice %16 {offsets = [56, 0], sizes = [8, 128], strides = [1, 1]} : vector<64x128xf32> to vector<8x128xf32>
    %52 = arith.addf %50, %51 : vector<8x128xf32>
    %53 = math.tanh %52 : vector<8x128xf32>
    %cst_30 = arith.constant dense<0.000000e+00> : vector<8x128xf32>
    %54 = tpu.matmul %53, %7, %cst_30 {dimension_numbers = #tpu.dot_dimension_numbers<[1], [0], [0], [1], [0, 0, 1, 1], [], []>} : vector<8x128xf32>, vector<128x128xf32>, vector<8x128xf32> -> vector<8x128xf32>
    %55 = vector.extract_strided_slice %20 {offsets = [0, 0], sizes = [8, 128], strides = [1, 1]} : vector<64x128xf32> to vector<8x128xf32>
    %56 = arith.addf %54, %55 : vector<8x128xf32>
    %57 = math.tanh %56 : vector<8x128xf32>
    %c0_31 = arith.constant 0 : index
    %c0_32 = arith.constant 0 : index
    %58 = vector.load %arg5[%c0_31, %c0_32] : memref<64x128xf32, #tpu.memory_space<vmem>>, vector<8x128xf32>
    tpu.vector_store %arg5[%c0_31, %c0_32], %57 {strides = array<i32>} : memref<64x128xf32, #tpu.memory_space<vmem>>, vector<8x128xf32>,
    %cst_33 = arith.constant dense<0.000000e+00> : vector<8x128xf32>
    %59 = tpu.matmul %57, %7, %cst_33 {dimension_numbers = #tpu.dot_dimension_numbers<[1], [0], [0], [1], [0, 0, 1, 1], [], []>} : vector<8x128xf32>, vector<128x128xf32>, vector<8x128xf32> -> vector<8x128xf32>
    %60 = vector.extract_strided_slice %20 {offsets = [8, 0], sizes = [8, 128], strides = [1, 1]} : vector<64x128xf32> to vector<8x128xf32>
    %61 = arith.addf %59, %60 : vector<8x128xf32>
    %62 = math.tanh %61 : vector<8x128xf32>
    %c8 = arith.constant 8 : index
    %c0_34 = arith.constant 0 : index
    %63 = vector.load %arg5[%c8, %c0_34] : memref<64x128xf32, #tpu.memory_space<vmem>>, vector<8x128xf32>
    tpu.vector_store %arg5[%c8, %c0_34], %62 {strides = array<i32>} : memref<64x128xf32, #tpu.memory_space<vmem>>, vector<8x128xf32>,
    %cst_35 = arith.constant dense<0.000000e+00> : vector<8x128xf32>
    %64 = tpu.matmul %62, %7, %cst_35 {dimension_numbers = #tpu.dot_dimension_numbers<[1], [0], [0], [1], [0, 0, 1, 1], [], []>} : vector<8x128xf32>, vector<128x128xf32>, vector<8x128xf32> -> vector<8x128xf32>
    %65 = vector.extract_strided_slice %20 {offsets = [16, 0], sizes = [8, 128], strides = [1, 1]} : vector<64x128xf32> to vector<8x128xf32>
    %66 = arith.addf %64, %65 : vector<8x128xf32>
    %67 = math.tanh %66 : vector<8x128xf32>
    %c16 = arith.constant 16 : index
    %c0_36 = arith.constant 0 : index
    %68 = vector.load %arg5[%c16, %c0_36] : memref<64x128xf32, #tpu.memory_space<vmem>>, vector<8x128xf32>
    tpu.vector_store %arg5[%c16, %c0_36], %67 {strides = array<i32>} : memref<64x128xf32, #tpu.memory_space<vmem>>, vector<8x128xf32>,
    %cst_37 = arith.constant dense<0.000000e+00> : vector<8x128xf32>
    %69 = tpu.matmul %67, %7, %cst_37 {dimension_numbers = #tpu.dot_dimension_numbers<[1], [0], [0], [1], [0, 0, 1, 1], [], []>} : vector<8x128xf32>, vector<128x128xf32>, vector<8x128xf32> -> vector<8x128xf32>
    %70 = vector.extract_strided_slice %20 {offsets = [24, 0], sizes = [8, 128], strides = [1, 1]} : vector<64x128xf32> to vector<8x128xf32>
    %71 = arith.addf %69, %70 : vector<8x128xf32>
    %72 = math.tanh %71 : vector<8x128xf32>
    %c24 = arith.constant 24 : index
    %c0_38 = arith.constant 0 : index
    %73 = vector.load %arg5[%c24, %c0_38] : memref<64x128xf32, #tpu.memory_space<vmem>>, vector<8x128xf32>
    tpu.vector_store %arg5[%c24, %c0_38], %72 {strides = array<i32>} : memref<64x128xf32, #tpu.memory_space<vmem>>, vector<8x128xf32>,
    %cst_39 = arith.constant dense<0.000000e+00> : vector<8x128xf32>
    %74 = tpu.matmul %72, %7, %cst_39 {dimension_numbers = #tpu.dot_dimension_numbers<[1], [0], [0], [1], [0, 0, 1, 1], [], []>} : vector<8x128xf32>, vector<128x128xf32>, vector<8x128xf32> -> vector<8x128xf32>
    %75 = vector.extract_strided_slice %20 {offsets = [32, 0], sizes = [8, 128], strides = [1, 1]} : vector<64x128xf32> to vector<8x128xf32>
    %76 = arith.addf %74, %75 : vector<8x128xf32>
    %77 = math.tanh %76 : vector<8x128xf32>
    %c32 = arith.constant 32 : index
    %c0_40 = arith.constant 0 : index
    %78 = vector.load %arg5[%c32, %c0_40] : memref<64x128xf32, #tpu.memory_space<vmem>>, vector<8x128xf32>
    tpu.vector_store %arg5[%c32, %c0_40], %77 {strides = array<i32>} : memref<64x128xf32, #tpu.memory_space<vmem>>, vector<8x128xf32>,
    %cst_41 = arith.constant dense<0.000000e+00> : vector<8x128xf32>
    %79 = tpu.matmul %77, %7, %cst_41 {dimension_numbers = #tpu.dot_dimension_numbers<[1], [0], [0], [1], [0, 0, 1, 1], [], []>} : vector<8x128xf32>, vector<128x128xf32>, vector<8x128xf32> -> vector<8x128xf32>
    %80 = vector.extract_strided_slice %20 {offsets = [40, 0], sizes = [8, 128], strides = [1, 1]} : vector<64x128xf32> to vector<8x128xf32>
    %81 = arith.addf %79, %80 : vector<8x128xf32>
    %82 = math.tanh %81 : vector<8x128xf32>
    %c40 = arith.constant 40 : index
    %c0_42 = arith.constant 0 : index
    %83 = vector.load %arg5[%c40, %c0_42] : memref<64x128xf32, #tpu.memory_space<vmem>>, vector<8x128xf32>
    tpu.vector_store %arg5[%c40, %c0_42], %82 {strides = array<i32>} : memref<64x128xf32, #tpu.memory_space<vmem>>, vector<8x128xf32>,
    %cst_43 = arith.constant dense<0.000000e+00> : vector<8x128xf32>
    %84 = tpu.matmul %82, %7, %cst_43 {dimension_numbers = #tpu.dot_dimension_numbers<[1], [0], [0], [1], [0, 0, 1, 1], [], []>} : vector<8x128xf32>, vector<128x128xf32>, vector<8x128xf32> -> vector<8x128xf32>
    %85 = vector.extract_strided_slice %20 {offsets = [48, 0], sizes = [8, 128], strides = [1, 1]} : vector<64x128xf32> to vector<8x128xf32>
    %86 = arith.addf %84, %85 : vector<8x128xf32>
    %87 = math.tanh %86 : vector<8x128xf32>
    %c48 = arith.constant 48 : index
    %c0_44 = arith.constant 0 : index
    %88 = vector.load %arg5[%c48, %c0_44] : memref<64x128xf32, #tpu.memory_space<vmem>>, vector<8x128xf32>
    tpu.vector_store %arg5[%c48, %c0_44], %87 {strides = array<i32>} : memref<64x128xf32, #tpu.memory_space<vmem>>, vector<8x128xf32>,
    %cst_45 = arith.constant dense<0.000000e+00> : vector<8x128xf32>
    %89 = tpu.matmul %87, %7, %cst_45 {dimension_numbers = #tpu.dot_dimension_numbers<[1], [0], [0], [1], [0, 0, 1, 1], [], []>} : vector<8x128xf32>, vector<128x128xf32>, vector<8x128xf32> -> vector<8x128xf32>
    %90 = vector.extract_strided_slice %20 {offsets = [56, 0], sizes = [8, 128], strides = [1, 1]} : vector<64x128xf32> to vector<8x128xf32>
    %91 = arith.addf %89, %90 : vector<8x128xf32>
    %92 = math.tanh %91 : vector<8x128xf32>
    %c56 = arith.constant 56 : index
    %c0_46 = arith.constant 0 : index
    %93 = vector.load %arg5[%c56, %c0_46] : memref<64x128xf32, #tpu.memory_space<vmem>>, vector<8x128xf32>
    tpu.vector_store %arg5[%c56, %c0_46], %92 {strides = array<i32>} : memref<64x128xf32, #tpu.memory_space<vmem>>, vector<8x128xf32>,
    %c0_47 = arith.constant 0 : index
    %c0_48 = arith.constant 0 : index
    %94 = vector.load %arg5[%c0_47, %c0_48] : memref<64x128xf32, #tpu.memory_space<vmem>>, vector<64x128xf32>
    %cst_49 = arith.constant dense<0.000000e+00> : vector<64x128xf32>
    %95 = tpu.matmul %94, %9, %cst_49 {dimension_numbers = #tpu.dot_dimension_numbers<[1], [0], [0], [1], [0, 0, 1, 1], [], []>} : vector<64x128xf32>, vector<128x128xf32>, vector<64x128xf32> -> vector<64x128xf32>
    %96 = vector.broadcast %12 : vector<1x128xf32> to vector<64x128xf32>
    %97 = arith.addf %95, %96 : vector<64x128xf32>
    %c0_50 = arith.constant 0 : index
    %c0_51 = arith.constant 0 : index
    %98 = vector.load %arg4[%c0_50, %c0_51] : memref<64x128xf32, #tpu.memory_space<vmem>>, vector<64x128xf32>
    tpu.vector_store %arg4[%c0_50, %c0_51], %97 {strides = array<i32>} : memref<64x128xf32, #tpu.memory_space<vmem>>, vector<64x128xf32>,
    return
  }
}

</mosaic_0001>

<llo_original>
// kernel: tpu_custom_call.1
$region0: #{tpu_custom_call.1}
  #allocation0 [shape = 'u32[]', space=smem, size = 0x4, offset = 0x4, fixed_abs, tag = 'smem constant byte address 0x4 - core index']
  #allocation1 [shape = 'u32[144,128]{1,0:T(1,128)}', space=vmem, size = 0x12000, scoped, tag = 'internal scratch']
  #allocation2 [shape = 'f32[64,128]{1,0:T(8,128)}', space=vmem, size = 0x8000, scoped, tag = 'scratch operand']
  %s0 = inlined_call_operand.hbm [shape: f32[128,128], index: 0, kind: input, shape index: {}]
  %s1 = inlined_call_operand.hbm [shape: f32[8,128], index: 1, kind: input, shape index: {}]
  %s2 = inlined_call_operand.hbm [shape: f32[5,128,128], index: 2, kind: input, shape index: {}]
  %s3 = inlined_call_operand.vmem [shape: f32[3,128], index: 3, kind: input, shape index: {}]
  %s4 = inlined_call_operand.hbm [shape: f32[64,128], index: 4, kind: output, shape index: {}]
  %s5 = sld [smem:[#allocation0]]
  $region38: #{tpu_custom_call.1} parent=0
    _
  %s7 = ssub.s32 1, %s5
  %s8 = scalar_select 0, %s7, %s5
  $region1: #{tpu_custom_call.1} parent=0
    #allocation3 [shape = 'u8[65536]{0}', space=vmem, size = 0x10000, scoped, tag = 'input window, operand 0, single buffered']
    #allocation4 [shape = 's32[1]{0}', space=sflag, size = 0x4, scoped, tag = 'scoped memory for tpu_custom_call.1']
    #allocation5 [shape = 's32[1]{0}', space=sflag, size = 0x4, scoped, tag = 'scoped memory for tpu_custom_call.1']
    #allocation6 [shape = 'u8[4096]{0}', space=vmem, size = 0x1000, scoped, tag = 'input window, operand 1, single buffered']
    #allocation7 [shape = 's32[1]{0}', space=sflag, size = 0x4, scoped, tag = 'scoped memory for tpu_custom_call.1']
    #allocation8 [shape = 'u8[327680]{0}', space=vmem, size = 0x50000, scoped, tag = 'input window, operand 2, single buffered']
    #allocation9 [shape = 'u8[32768]{0}', space=vmem, size = 0x8000, scoped, tag = 'output window, operand 0, single buffered']
    %9 = vsyncpa [#allocation4], 0
    %10 = vsyncpa [#allocation7], 0
    %11 = vsyncpa [#allocation5], 0
    // Predicated region
    $region2: #{tpu_custom_call.1} parent=1 // pred_check
      _
    $region3: #{tpu_custom_call.1} parent=1 // pred_check_branch
      %13 = sbr.rel (0) target = $region5
    $region4: #{tpu_custom_call.1} parent=1 // pred_region
      %s15 = ssub.s32 2048, 2048
      %16 = vsyncadd [#allocation4], %s15
      %s17 = sshll.u32 [#allocation3], 4
      %s18 = int_to_ptr.vmem [resolvable:$true] %s17
      %23 = dma.hbm_to_vmem [thread:$0]  %s0, 2048, %s18, [#allocation4], 128, 128, 8
    $region5: #{tpu_custom_call.1} parent=1 // pred_fallthru
      _
    // Predicated region
    $region6: #{tpu_custom_call.1} parent=1 // pred_check
      _
    $region7: #{tpu_custom_call.1} parent=1 // pred_check_branch
      %25 = sbr.rel (0) target = $region9
    $region8: #{tpu_custom_call.1} parent=1 // pred_region
      %s27 = ssub.s32 128, 128
      %28 = vsyncadd [#allocation7], %s27
      %s30 = sshll.u32 [#allocation6], 4
      %s31 = int_to_ptr.vmem [resolvable:$true] %s30
      %33 = dma.hbm_to_vmem [thread:$0]  %s1, 128, %s31, [#allocation7]
    $region9: #{tpu_custom_call.1} parent=1 // pred_fallthru
      _
    // Predicated region
    $region10: #{tpu_custom_call.1} parent=1 // pred_check
      _
    $region11: #{tpu_custom_call.1} parent=1 // pred_check_branch
      %35 = sbr.rel (0) target = $region13
    $region12: #{tpu_custom_call.1} parent=1 // pred_region
      %s37 = ssub.s32 10240, 10240
      %38 = vsyncadd [#allocation7], %s37
      %s39 = sshll.u32 [#allocation8], 4
      %s40 = int_to_ptr.vmem [resolvable:$true] %s39
      %45 = dma.hbm_to_vmem [thread:$0]  %s2, 10240, %s40, [#allocation7], 128, 128, 8
    $region13: #{tpu_custom_call.1} parent=1 // pred_fallthru
      _
    // Predicated region
    $region14: #{tpu_custom_call.1} parent=1 // pred_check
      _
    $region15: #{tpu_custom_call.1} parent=1 // pred_check_branch
      %47 = sbr.rel (0) target = $region17
    $region16: #{tpu_custom_call.1} parent=1 // pred_region
      _
    $region17: #{tpu_custom_call.1} parent=1 // pred_fallthru
      _
    // Predicated region
    $region18: #{tpu_custom_call.1} parent=1 // pred_check
      _
    $region19: #{tpu_custom_call.1} parent=1 // pred_check_branch
      %49 = sbr.rel (0) target = $region21
    $region20: #{tpu_custom_call.1} parent=1 // pred_region
      %50 = dma.done [#allocation4], 2048
    $region21: #{tpu_custom_call.1} parent=1 // pred_fallthru
      _
    // Predicated region
    $region22: #{tpu_custom_call.1} parent=1 // pred_check
      _
    $region23: #{tpu_custom_call.1} parent=1 // pred_check_branch
      %52 = sbr.rel (0) target = $region25
    $region24: #{tpu_custom_call.1} parent=1 // pred_region
      %53 = dma.done [#allocation7], 128
    $region25: #{tpu_custom_call.1} parent=1 // pred_fallthru
      _
    // Predicated region
    $region26: #{tpu_custom_call.1} parent=1 // pred_check
      _
    $region27: #{tpu_custom_call.1} parent=1 // pred_check_branch
      %55 = sbr.rel (0) target = $region29
    $region28: #{tpu_custom_call.1} parent=1 // pred_region
      %56 = dma.done [#allocation7], 10240
    $region29: #{tpu_custom_call.1} parent=1 // pred_fallthru
      _
    %v57 = vld [vmem:[#allocation8] sm:$0xff]
    %v58 = vld [vmem:[#allocation8 + $0x8] sm:$0xff]
    %v59 = vld [vmem:[#allocation8 + $0x10] sm:$0xff]
    %v60 = vld [vmem:[#allocation8 + $0x18] sm:$0xff]
    %v61 = vld [vmem:[#allocation8 + $0x20] sm:$0xff]
    %v62 = vld [vmem:[#allocation8 + $0x28] sm:$0xff]
    %v63 = vld [vmem:[#allocation8 + $0x30] sm:$0xff]
    %v64 = vld [vmem:[#allocation8 + $0x38] sm:$0xff]
    %v65 = vld [vmem:[#allocation8 + $0x40] sm:$0xff]
    %v66 = vld [vmem:[#allocation8 + $0x48] sm:$0xff]
    %v67 = vld [vmem:[#allocation8 + $0x50] sm:$0xff]
    %v68 = vld [vmem:[#allocation8 + $0x58] sm:$0xff]
    %v69 = vld [vmem:[#allocation8 + $0x60] sm:$0xff]
    %v70 = vld [vmem:[#allocation8 + $0x68] sm:$0xff]
    %v71 = vld [vmem:[#allocation8 + $0x70] sm:$0xff]
    %v72 = vld [vmem:[#allocation8 + $0x78] sm:$0xff]
    %s73 = scalar_lea.vmem [#allocation8], 128
    %v74 = vld [vmem:[%s73] sm:$0xff]
    %v75 = vld [vmem:[%s73 + $0x8] sm:$0xff]
    %v76 = vld [vmem:[%s73 + $0x10] sm:$0xff]
    %v77 = vld [vmem:[%s73 + $0x18] sm:$0xff]
    %v78 = vld [vmem:[%s73 + $0x20] sm:$0xff]
    %v79 = vld [vmem:[%s73 + $0x28] sm:$0xff]
    %v80 = vld [vmem:[%s73 + $0x30] sm:$0xff]
    %v81 = vld [vmem:[%s73 + $0x38] sm:$0xff]
    %v82 = vld [vmem:[%s73 + $0x40] sm:$0xff]
    %v83 = vld [vmem:[%s73 + $0x48] sm:$0xff]
    %v84 = vld [vmem:[%s73 + $0x50] sm:$0xff]
    %v85 = vld [vmem:[%s73 + $0x58] sm:$0xff]
    %v86 = vld [vmem:[%s73 + $0x60] sm:$0xff]
    %v87 = vld [vmem:[%s73 + $0x68] sm:$0xff]
    %v88 = vld [vmem:[%s73 + $0x70] sm:$0xff]
    %v89 = vld [vmem:[%s73 + $0x78] sm:$0xff]
    %s90 = scalar_lea.vmem [#allocation8], 256
    %v91 = vld [vmem:[%s90] sm:$0xff]
    %v92 = vld [vmem:[%s90 + $0x8] sm:$0xff]
    %v93 = vld [vmem:[%s90 + $0x10] sm:$0xff]
    %v94 = vld [vmem:[%s90 + $0x18] sm:$0xff]
    %v95 = vld [vmem:[%s90 + $0x20] sm:$0xff]
    %v96 = vld [vmem:[%s90 + $0x28] sm:$0xff]
    %v97 = vld [vmem:[%s90 + $0x30] sm:$0xff]
    %v98 = vld [vmem:[%s90 + $0x38] sm:$0xff]
    %v99 = vld [vmem:[%s90 + $0x40] sm:$0xff]
    %v100 = vld [vmem:[%s90 + $0x48] sm:$0xff]
    %v101 = vld [vmem:[%s90 + $0x50] sm:$0xff]
    %v102 = vld [vmem:[%s90 + $0x58] sm:$0xff]
    %v103 = vld [vmem:[%s90 + $0x60] sm:$0xff]
    %v104 = vld [vmem:[%s90 + $0x68] sm:$0xff]
    %v105 = vld [vmem:[%s90 + $0x70] sm:$0xff]
    %v106 = vld [vmem:[%s90 + $0x78] sm:$0xff]
    %s107 = scalar_lea.vmem [#allocation8], 384
    %v108 = vld [vmem:[%s107] sm:$0xff]
    %v109 = vld [vmem:[%s107 + $0x8] sm:$0xff]
    %v110 = vld [vmem:[%s107 + $0x10] sm:$0xff]
    %v111 = vld [vmem:[%s107 + $0x18] sm:$0xff]
    %v112 = vld [vmem:[%s107 + $0x20] sm:$0xff]
    %v113 = vld [vmem:[%s107 + $0x28] sm:$0xff]
    %v114 = vld [vmem:[%s107 + $0x30] sm:$0xff]
    %v115 = vld [vmem:[%s107 + $0x38] sm:$0xff]
    %v116 = vld [vmem:[%s107 + $0x40] sm:$0xff]
    %v117 = vld [vmem:[%s107 + $0x48] sm:$0xff]
    %v118 = vld [vmem:[%s107 + $0x50] sm:$0xff]
    %v119 = vld [vmem:[%s107 + $0x58] sm:$0xff]
    %v120 = vld [vmem:[%s107 + $0x60] sm:$0xff]
    %v121 = vld [vmem:[%s107 + $0x68] sm:$0xff]
    %v122 = vld [vmem:[%s107 + $0x70] sm:$0xff]
    %v123 = vld [vmem:[%s107 + $0x78] sm:$0xff]
    %s124 = scalar_lea.vmem [#allocation8], 512
    %v125 = vld [vmem:[%s124] sm:$0xff]
    %v126 = vld [vmem:[%s124 + $0x8] sm:$0xff]
    %v127 = vld [vmem:[%s124 + $0x10] sm:$0xff]
    %v128 = vld [vmem:[%s124 + $0x18] sm:$0xff]
    %v129 = vld [vmem:[%s124 + $0x20] sm:$0xff]
    %v130 = vld [vmem:[%s124 + $0x28] sm:$0xff]
    %v131 = vld [vmem:[%s124 + $0x30] sm:$0xff]
    %v132 = vld [vmem:[%s124 + $0x38] sm:$0xff]
    %v133 = vld [vmem:[%s124 + $0x40] sm:$0xff]
    %v134 = vld [vmem:[%s124 + $0x48] sm:$0xff]
    %v135 = vld [vmem:[%s124 + $0x50] sm:$0xff]
    %v136 = vld [vmem:[%s124 + $0x58] sm:$0xff]
    %v137 = vld [vmem:[%s124 + $0x60] sm:$0xff]
    %v138 = vld [vmem:[%s124 + $0x68] sm:$0xff]
    %v139 = vld [vmem:[%s124 + $0x70] sm:$0xff]
    %v140 = vld [vmem:[%s124 + $0x78] sm:$0xff]
    %v141 = vld [vmem:[%s3] sm:$0x1]
    %v142 = vld [vmem:[%s3 + $0x1] sm:$0x1]
    %v143 = vld [vmem:[%s3 + $0x2] sm:$0x1]
    %v144 = vld [vmem:[#allocation3] sm:$0xff]
    %v145 = vld [vmem:[#allocation3 + $0x8] sm:$0xff]
    %v146 = vld [vmem:[#allocation3 + $0x10] sm:$0xff]
    %v147 = vld [vmem:[#allocation3 + $0x18] sm:$0xff]
    %v148 = vld [vmem:[#allocation3 + $0x20] sm:$0xff]
    %v149 = vld [vmem:[#allocation3 + $0x28] sm:$0xff]
    %v150 = vld [vmem:[#allocation3 + $0x30] sm:$0xff]
    %v151 = vld [vmem:[#allocation3 + $0x38] sm:$0xff]
    %v152 = vlaneseq
    %v153 = vshrl.u32 %v152, 7
    %v154 = vsub.s32 0, %v153
    %v155 = vrot.slane %v141, %v154
    %156 = vmatprep.subr.mxu0 0.0
    %157 = vmatpush1.msra.mxu0 %v72
    %158 = vmatprep.subr.mxu0 0.0
    %159 = vmatpush1.msra.mxu0 %v71
    %160 = vmatprep.subr.mxu0 0.0
    %161 = vmatpush1.msra.mxu0 %v70
    %162 = vmatprep.subr.mxu0 0.0
    %163 = vmatpush1.msra.mxu0 %v69
    %164 = vmatprep.subr.mxu0 0.0
    %165 = vmatpush1.msra.mxu0 %v68
    %166 = vmatprep.subr.mxu0 0.0
    %167 = vmatpush1.msra.mxu0 %v67
    %168 = vmatprep.subr.mxu0 0.0
    %169 = vmatpush1.msra.mxu0 %v66
    %170 = vmatprep.subr.mxu0 0.0
    %171 = vmatpush1.msra.mxu0 %v65
    %172 = vmatprep.subr.mxu0 0.0
    %173 = vmatpush1.msra.mxu0 %v64
    %174 = vmatprep.subr.mxu0 0.0
    %175 = vmatpush1.msra.mxu0 %v63
    %176 = vmatprep.subr.mxu0 0.0
    %177 = vmatpush1.msra.mxu0 %v62
    %178 = vmatprep.subr.mxu0 0.0
    %179 = vmatpush1.msra.mxu0 %v61
    %180 = vmatprep.subr.mxu0 0.0
    %181 = vmatpush1.msra.mxu0 %v60
    %182 = vmatprep.subr.mxu0 0.0
    %183 = vmatpush1.msra.mxu0 %v59
    %184 = vmatprep.subr.mxu0 0.0
    %185 = vmatpush1.msra.mxu0 %v58
    %186 = vmatprep.subr.mxu0 0.0
    %187 = vmatpush1.msra.mxu0 %v57
    %188 = vmatprep.subr.mxu0 0.0
    %189 = vmatpush2.msra.mxu0 0.0
    %190 = vmatprep.subr.mxu0 0.0
    %191 = vmatpush2.msra.mxu0 0.0
    %192 = vmatprep.subr.mxu0 0.0
    %193 = vmatpush2.msra.mxu0 0.0
    %194 = vmatprep.subr.mxu0 0.0
    %195 = vmatpush2.msra.mxu0 0.0
    %196 = vmatprep.subr.mxu0 0.0
    %197 = vmatpush2.msra.mxu0 0.0
    %198 = vmatprep.subr.mxu0 0.0
    %199 = vmatpush2.msra.mxu0 0.0
    %200 = vmatprep.subr.mxu0 0.0
    %201 = vmatpush2.msra.mxu0 0.0
    %202 = vmatprep.subr.mxu0 0.0
    %203 = vmatpush2.msra.mxu0 0.0
    %204 = vmatprep.subr.mxu0 0.0
    %205 = vmatpush2.msra.mxu0 0.0
    %206 = vmatprep.subr.mxu0 0.0
    %207 = vmatpush2.msra.mxu0 0.0
    %208 = vmatprep.subr.mxu0 0.0
    %209 = vmatpush2.msra.mxu0 0.0
    %210 = vmatprep.subr.mxu0 0.0
    %211 = vmatpush2.msra.mxu0 0.0
    %212 = vmatprep.subr.mxu0 0.0
    %213 = vmatpush2.msra.mxu0 0.0
    %214 = vmatprep.subr.mxu0 0.0
    %215 = vmatpush2.msra.mxu0 0.0
    %216 = vmatprep.subr.mxu0 0.0
    %217 = vmatpush2.msra.mxu0 0.0
    %218 = vmatprep.subr.mxu0 0.0
    %219 = vmatpush2.msra.mxu0 0.0
    %220 = vmatprep.mubr.f32.mxu0 0.0
    %221 = vmatmul.mubr.f32.gmra.mxu0 %v144
    %v222 = vpop.f32.mrf.mxu0
    %v223 = vadd.f32 %v155, %v222
    %v224 = vpop.f32.mrf.mxu0
    %225 = vmatprep.mubr.f32.mxu0 0.0
    %226 = vmatmul.mubr.f32.gmra.mxu0 %v145
    %v227 = vpop.f32.mrf.mxu0
    %v228 = vadd.f32 %v155, %v227
    %v229 = vpop.f32.mrf.mxu0
    %230 = vmatprep.mubr.f32.mxu0 0.0
    %231 = vmatmul.mubr.f32.gmra.mxu0 %v146
    %v232 = vpop.f32.mrf.mxu0
    %v233 = vadd.f32 %v155, %v232
    %v234 = vpop.f32.mrf.mxu0
    %235 = vmatprep.mubr.f32.mxu0 0.0
    %236 = vmatmul.mubr.f32.gmra.mxu0 %v147
    %v237 = vpop.f32.mrf.mxu0
    %v238 = vadd.f32 %v155, %v237
    %v239 = vpop.f32.mrf.mxu0
    %240 = vmatprep.mubr.f32.mxu0 0.0
    %241 = vmatmul.mubr.f32.gmra.mxu0 %v148
    %v242 = vpop.f32.mrf.mxu0
    %v243 = vadd.f32 %v155, %v242
    %v244 = vpop.f32.mrf.mxu0
    %245 = vmatprep.mubr.f32.mxu0 0.0
    %246 = vmatmul.mubr.f32.gmra.mxu0 %v149
    %v247 = vpop.f32.mrf.mxu0
    %v248 = vadd.f32 %v155, %v247
    %v249 = vpop.f32.mrf.mxu0
    %250 = vmatprep.mubr.f32.mxu0 0.0
    %251 = vmatmul.mubr.f32.gmra.mxu0 %v150
    %v252 = vpop.f32.mrf.mxu0
    %v253 = vadd.f32 %v155, %v252
    %v254 = vpop.f32.mrf.mxu0
    %255 = vmatprep.mubr.f32.mxu0 0.0
    %256 = vmatmul.mubr.f32.gmra.mxu0 %v151
    %v257 = vpop.f32.mrf.mxu0
    %v258 = vadd.f32 %v155, %v257
    %v259 = vpop.f32.mrf.mxu0
    %260 = vdwg.mxu0
    %v261 = vld [vmem:[#allocation3 + $0x40] sm:$0xff]
    %v262 = vld [vmem:[#allocation3 + $0x48] sm:$0xff]
    %v263 = vld [vmem:[#allocation3 + $0x50] sm:$0xff]
    %v264 = vld [vmem:[#allocation3 + $0x58] sm:$0xff]
    %v265 = vld [vmem:[#allocation3 + $0x60] sm:$0xff]
    %v266 = vld [vmem:[#allocation3 + $0x68] sm:$0xff]
    %v267 = vld [vmem:[#allocation3 + $0x70] sm:$0xff]
    %v268 = vld [vmem:[#allocation3 + $0x78] sm:$0xff]
    %v269 = vlaneseq
    %v270 = vshrl.u32 %v269, 7
    %v271 = vsub.s32 0, %v270
    %v272 = vrot.slane %v142, %v271
    %273 = vmatprep.subr.mxu0 0.0
    %274 = vmatpush1.msra.mxu0 %v89
    %275 = vmatprep.subr.mxu0 0.0
    %276 = vmatpush1.msra.mxu0 %v88
    %277 = vmatprep.subr.mxu0 0.0
    %278 = vmatpush1.msra.mxu0 %v87
    %279 = vmatprep.subr.mxu0 0.0
    %280 = vmatpush1.msra.mxu0 %v86
    %281 = vmatprep.subr.mxu0 0.0
    %282 = vmatpush1.msra.mxu0 %v85
    %283 = vmatprep.subr.mxu0 0.0
    %284 = vmatpush1.msra.mxu0 %v84
    %285 = vmatprep.subr.mxu0 0.0
    %286 = vmatpush1.msra.mxu0 %v83
    %287 = vmatprep.subr.mxu0 0.0
    %288 = vmatpush1.msra.mxu0 %v82
    %289 = vmatprep.subr.mxu0 0.0
    %290 = vmatpush1.msra.mxu0 %v81
    %291 = vmatprep.subr.mxu0 0.0
    %292 = vmatpush1.msra.mxu0 %v80
    %293 = vmatprep.subr.mxu0 0.0
    %294 = vmatpush1.msra.mxu0 %v79
    %295 = vmatprep.subr.mxu0 0.0
    %296 = vmatpush1.msra.mxu0 %v78
    %297 = vmatprep.subr.mxu0 0.0
    %298 = vmatpush1.msra.mxu0 %v77
    %299 = vmatprep.subr.mxu0 0.0
    %300 = vmatpush1.msra.mxu0 %v76
    %301 = vmatprep.subr.mxu0 0.0
    %302 = vmatpush1.msra.mxu0 %v75
    %303 = vmatprep.subr.mxu0 0.0
    %304 = vmatpush1.msra.mxu0 %v74
    %305 = vmatprep.subr.mxu0 0.0
    %306 = vmatpush2.msra.mxu0 0.0
    %307 = vmatprep.subr.mxu0 0.0
    %308 = vmatpush2.msra.mxu0 0.0
    %309 = vmatprep.subr.mxu0 0.0
    %310 = vmatpush2.msra.mxu0 0.0
    %311 = vmatprep.subr.mxu0 0.0
    %312 = vmatpush2.msra.mxu0 0.0
    %313 = vmatprep.subr.mxu0 0.0
    %314 = vmatpush2.msra.mxu0 0.0
    %315 = vmatprep.subr.mxu0 0.0
    %316 = vmatpush2.msra.mxu0 0.0
    %317 = vmatprep.subr.mxu0 0.0
    %318 = vmatpush2.msra.mxu0 0.0
    %319 = vmatprep.subr.mxu0 0.0
    %320 = vmatpush2.msra.mxu0 0.0
    %321 = vmatprep.subr.mxu0 0.0
    %322 = vmatpush2.msra.mxu0 0.0
    %323 = vmatprep.subr.mxu0 0.0
    %324 = vmatpush2.msra.mxu0 0.0
    %325 = vmatprep.subr.mxu0 0.0
    %326 = vmatpush2.msra.mxu0 0.0
    %327 = vmatprep.subr.mxu0 0.0
    %328 = vmatpush2.msra.mxu0 0.0
    %329 = vmatprep.subr.mxu0 0.0
    %330 = vmatpush2.msra.mxu0 0.0
    %331 = vmatprep.subr.mxu0 0.0
    %332 = vmatpush2.msra.mxu0 0.0
    %333 = vmatprep.subr.mxu0 0.0
    %334 = vmatpush2.msra.mxu0 0.0
    %335 = vmatprep.subr.mxu0 0.0
    %336 = vmatpush2.msra.mxu0 0.0
    %337 = vmatprep.mubr.f32.mxu0 0.0
    %338 = vmatmul.mubr.f32.gmra.mxu0 %v261
    %v339 = vpop.f32.mrf.mxu0
    %v340 = vadd.f32 %v272, %v339
    %v341 = vpop.f32.mrf.mxu0
    %342 = vmatprep.mubr.f32.mxu0 0.0
    %343 = vmatmul.mubr.f32.gmra.mxu0 %v262
    %v344 = vpop.f32.mrf.mxu0
    %v345 = vadd.f32 %v272, %v344
    %v346 = vpop.f32.mrf.mxu0
    %347 = vmatprep.mubr.f32.mxu0 0.0
    %348 = vmatmul.mubr.f32.gmra.mxu0 %v263
    %v349 = vpop.f32.mrf.mxu0
    %v350 = vadd.f32 %v272, %v349
    %v351 = vpop.f32.mrf.mxu0
    %352 = vmatprep.mubr.f32.mxu0 0.0
    %353 = vmatmul.mubr.f32.gmra.mxu0 %v264
    %v354 = vpop.f32.mrf.mxu0
    %v355 = vadd.f32 %v272, %v354
    %v356 = vpop.f32.mrf.mxu0
    %357 = vmatprep.mubr.f32.mxu0 0.0
    %358 = vmatmul.mubr.f32.gmra.mxu0 %v265
    %v359 = vpop.f32.mrf.mxu0
    %v360 = vadd.f32 %v272, %v359
    %v361 = vpop.f32.mrf.mxu0
    %362 = vmatprep.mubr.f32.mxu0 0.0
    %363 = vmatmul.mubr.f32.gmra.mxu0 %v266
    %v364 = vpop.f32.mrf.mxu0
    %v365 = vadd.f32 %v272, %v364
    %v366 = vpop.f32.mrf.mxu0
    %367 = vmatprep.mubr.f32.mxu0 0.0
    %368 = vmatmul.mubr.f32.gmra.mxu0 %v267
    %v369 = vpop.f32.mrf.mxu0
    %v370 = vadd.f32 %v272, %v369
    %v371 = vpop.f32.mrf.mxu0
    %372 = vmatprep.mubr.f32.mxu0 0.0
    %373 = vmatmul.mubr.f32.gmra.mxu0 %v268
    %v374 = vpop.f32.mrf.mxu0
    %v375 = vadd.f32 %v272, %v374
    %v376 = vpop.f32.mrf.mxu0
    %377 = vdwg.mxu0
    %v378 = vld [vmem:[#allocation6] sm:$0xff]
    %379 = vmatprep.subr.mxu0 0.0
    %380 = vmatpush1.msra.mxu0 %v106
    %381 = vmatprep.subr.mxu0 0.0
    %382 = vmatpush1.msra.mxu0 %v105
    %383 = vmatprep.subr.mxu0 0.0
    %384 = vmatpush1.msra.mxu0 %v104
    %385 = vmatprep.subr.mxu0 0.0
    %386 = vmatpush1.msra.mxu0 %v103
    %387 = vmatprep.subr.mxu0 0.0
    %388 = vmatpush1.msra.mxu0 %v102
    %389 = vmatprep.subr.mxu0 0.0
    %390 = vmatpush1.msra.mxu0 %v101
    %391 = vmatprep.subr.mxu0 0.0
    %392 = vmatpush1.msra.mxu0 %v100
    %393 = vmatprep.subr.mxu0 0.0
    %394 = vmatpush1.msra.mxu0 %v99
    %395 = vmatprep.subr.mxu0 0.0
    %396 = vmatpush1.msra.mxu0 %v98
    %397 = vmatprep.subr.mxu0 0.0
    %398 = vmatpush1.msra.mxu0 %v97
    %399 = vmatprep.subr.mxu0 0.0
    %400 = vmatpush1.msra.mxu0 %v96
    %401 = vmatprep.subr.mxu0 0.0
    %402 = vmatpush1.msra.mxu0 %v95
    %403 = vmatprep.subr.mxu0 0.0
    %404 = vmatpush1.msra.mxu0 %v94
    %405 = vmatprep.subr.mxu0 0.0
    %406 = vmatpush1.msra.mxu0 %v93
    %407 = vmatprep.subr.mxu0 0.0
    %408 = vmatpush1.msra.mxu0 %v92
    %409 = vmatprep.subr.mxu0 0.0
    %410 = vmatpush1.msra.mxu0 %v91
    %411 = vmatprep.subr.mxu0 0.0
    %412 = vmatpush2.msra.mxu0 0.0
    %413 = vmatprep.subr.mxu0 0.0
    %414 = vmatpush2.msra.mxu0 0.0
    %415 = vmatprep.subr.mxu0 0.0
    %416 = vmatpush2.msra.mxu0 0.0
    %417 = vmatprep.subr.mxu0 0.0
    %418 = vmatpush2.msra.mxu0 0.0
    %419 = vmatprep.subr.mxu0 0.0
    %420 = vmatpush2.msra.mxu0 0.0
    %421 = vmatprep.subr.mxu0 0.0
    %422 = vmatpush2.msra.mxu0 0.0
    %423 = vmatprep.subr.mxu0 0.0
    %424 = vmatpush2.msra.mxu0 0.0
    %425 = vmatprep.subr.mxu0 0.0
    %426 = vmatpush2.msra.mxu0 0.0
    %427 = vmatprep.subr.mxu0 0.0
    %428 = vmatpush2.msra.mxu0 0.0
    %429 = vmatprep.subr.mxu0 0.0
    %430 = vmatpush2.msra.mxu0 0.0
    %431 = vmatprep.subr.mxu0 0.0
    %432 = vmatpush2.msra.mxu0 0.0
    %433 = vmatprep.subr.mxu0 0.0
    %434 = vmatpush2.msra.mxu0 0.0
    %435 = vmatprep.subr.mxu0 0.0
    %436 = vmatpush2.msra.mxu0 0.0
    %437 = vmatprep.subr.mxu0 0.0
    %438 = vmatpush2.msra.mxu0 0.0
    %439 = vmatprep.subr.mxu0 0.0
    %440 = vmatpush2.msra.mxu0 0.0
    %441 = vmatprep.subr.mxu0 0.0
    %442 = vmatpush2.msra.mxu0 0.0
    %443 = vmatprep.mubr.f32.mxu0 0.0
    %444 = vmatmul.mubr.f32.gmra.mxu0 %v378
    %v445 = vpop.f32.mrf.mxu0
    %v446 = vadd.f32 %v223, %v445
    %v447 = vpop.f32.mrf.mxu0
    %448 = vdwg.mxu0
    %v449 = vtanh.pop %v446
    %450 = vmatprep.subr.mxu0 0.0
    %451 = vmatpush1.msra.mxu0 %v106
    %452 = vmatprep.subr.mxu0 0.0
    %453 = vmatpush1.msra.mxu0 %v105
    %454 = vmatprep.subr.mxu0 0.0
    %455 = vmatpush1.msra.mxu0 %v104
    %456 = vmatprep.subr.mxu0 0.0
    %457 = vmatpush1.msra.mxu0 %v103
    %458 = vmatprep.subr.mxu0 0.0
    %459 = vmatpush1.msra.mxu0 %v102
    %460 = vmatprep.subr.mxu0 0.0
    %461 = vmatpush1.msra.mxu0 %v101
    %462 = vmatprep.subr.mxu0 0.0
    %463 = vmatpush1.msra.mxu0 %v100
    %464 = vmatprep.subr.mxu0 0.0
    %465 = vmatpush1.msra.mxu0 %v99
    %466 = vmatprep.subr.mxu0 0.0
    %467 = vmatpush1.msra.mxu0 %v98
    %468 = vmatprep.subr.mxu0 0.0
    %469 = vmatpush1.msra.mxu0 %v97
    %470 = vmatprep.subr.mxu0 0.0
    %471 = vmatpush1.msra.mxu0 %v96
    %472 = vmatprep.subr.mxu0 0.0
    %473 = vmatpush1.msra.mxu0 %v95
    %474 = vmatprep.subr.mxu0 0.0
    %475 = vmatpush1.msra.mxu0 %v94
    %476 = vmatprep.subr.mxu0 0.0
    %477 = vmatpush1.msra.mxu0 %v93
    %478 = vmatprep.subr.mxu0 0.0
    %479 = vmatpush1.msra.mxu0 %v92
    %480 = vmatprep.subr.mxu0 0.0
    %481 = vmatpush1.msra.mxu0 %v91
    %482 = vmatprep.subr.mxu0 0.0
    %483 = vmatpush2.msra.mxu0 0.0
    %484 = vmatprep.subr.mxu0 0.0
    %485 = vmatpush2.msra.mxu0 0.0
    %486 = vmatprep.subr.mxu0 0.0
    %487 = vmatpush2.msra.mxu0 0.0
    %488 = vmatprep.subr.mxu0 0.0
    %489 = vmatpush2.msra.mxu0 0.0
    %490 = vmatprep.subr.mxu0 0.0
    %491 = vmatpush2.msra.mxu0 0.0
    %492 = vmatprep.subr.mxu0 0.0
    %493 = vmatpush2.msra.mxu0 0.0
    %494 = vmatprep.subr.mxu0 0.0
    %495 = vmatpush2.msra.mxu0 0.0
    %496 = vmatprep.subr.mxu0 0.0
    %497 = vmatpush2.msra.mxu0 0.0
    %498 = vmatprep.subr.mxu0 0.0
    %499 = vmatpush2.msra.mxu0 0.0
    %500 = vmatprep.subr.mxu0 0.0
    %501 = vmatpush2.msra.mxu0 0.0
    %502 = vmatprep.subr.mxu0 0.0
    %503 = vmatpush2.msra.mxu0 0.0
    %504 = vmatprep.subr.mxu0 0.0
    %505 = vmatpush2.msra.mxu0 0.0
    %506 = vmatprep.subr.mxu0 0.0
    %507 = vmatpush2.msra.mxu0 0.0
    %508 = vmatprep.subr.mxu0 0.0
    %509 = vmatpush2.msra.mxu0 0.0
    %510 = vmatprep.subr.mxu0 0.0
    %511 = vmatpush2.msra.mxu0 0.0
    %512 = vmatprep.subr.mxu0 0.0
    %513 = vmatpush2.msra.mxu0 0.0
    %514 = vmatprep.mubr.f32.mxu0 0.0
    %515 = vmatmul.mubr.f32.gmra.mxu0 %v449
    %v516 = vpop.f32.mrf.mxu0
    %v517 = vadd.f32 %v228, %v516
    %v518 = vpop.f32.mrf.mxu0
    %519 = vdwg.mxu0
    %v520 = vtanh.pop %v517
    %521 = vmatprep.subr.mxu0 0.0
    %522 = vmatpush1.msra.mxu0 %v106
    %523 = vmatprep.subr.mxu0 0.0
    %524 = vmatpush1.msra.mxu0 %v105
    %525 = vmatprep.subr.mxu0 0.0
    %526 = vmatpush1.msra.mxu0 %v104
    %527 = vmatprep.subr.mxu0 0.0
    %528 = vmatpush1.msra.mxu0 %v103
    %529 = vmatprep.subr.mxu0 0.0
    %530 = vmatpush1.msra.mxu0 %v102
    %531 = vmatprep.subr.mxu0 0.0
    %532 = vmatpush1.msra.mxu0 %v101
    %533 = vmatprep.subr.mxu0 0.0
    %534 = vmatpush1.msra.mxu0 %v100
    %535 = vmatprep.subr.mxu0 0.0
    %536 = vmatpush1.msra.mxu0 %v99
    %537 = vmatprep.subr.mxu0 0.0
    %538 = vmatpush1.msra.mxu0 %v98
    %539 = vmatprep.subr.mxu0 0.0
    %540 = vmatpush1.msra.mxu0 %v97
    %541 = vmatprep.subr.mxu0 0.0
    %542 = vmatpush1.msra.mxu0 %v96
    %543 = vmatprep.subr.mxu0 0.0
    %544 = vmatpush1.msra.mxu0 %v95
    %545 = vmatprep.subr.mxu0 0.0
    %546 = vmatpush1.msra.mxu0 %v94
    %547 = vmatprep.subr.mxu0 0.0
    %548 = vmatpush1.msra.mxu0 %v93
    %549 = vmatprep.subr.mxu0 0.0
    %550 = vmatpush1.msra.mxu0 %v92
    %551 = vmatprep.subr.mxu0 0.0
    %552 = vmatpush1.msra.mxu0 %v91
    %553 = vmatprep.subr.mxu0 0.0
    %554 = vmatpush2.msra.mxu0 0.0
    %555 = vmatprep.subr.mxu0 0.0
    %556 = vmatpush2.msra.mxu0 0.0
    %557 = vmatprep.subr.mxu0 0.0
    %558 = vmatpush2.msra.mxu0 0.0
    %559 = vmatprep.subr.mxu0 0.0
    %560 = vmatpush2.msra.mxu0 0.0
    %561 = vmatprep.subr.mxu0 0.0
    %562 = vmatpush2.msra.mxu0 0.0
    %563 = vmatprep.subr.mxu0 0.0
    %564 = vmatpush2.msra.mxu0 0.0
    %565 = vmatprep.subr.mxu0 0.0
    %566 = vmatpush2.msra.mxu0 0.0
    %567 = vmatprep.subr.mxu0 0.0
    %568 = vmatpush2.msra.mxu0 0.0
    %569 = vmatprep.subr.mxu0 0.0
    %570 = vmatpush2.msra.mxu0 0.0
    %571 = vmatprep.subr.mxu0 0.0
    %572 = vmatpush2.msra.mxu0 0.0
    %573 = vmatprep.subr.mxu0 0.0
    %574 = vmatpush2.msra.mxu0 0.0
    %575 = vmatprep.subr.mxu0 0.0
    %576 = vmatpush2.msra.mxu0 0.0
    %577 = vmatprep.subr.mxu0 0.0
    %578 = vmatpush2.msra.mxu0 0.0
    %579 = vmatprep.subr.mxu0 0.0
    %580 = vmatpush2.msra.mxu0 0.0
    %581 = vmatprep.subr.mxu0 0.0
    %582 = vmatpush2.msra.mxu0 0.0
    %583 = vmatprep.subr.mxu0 0.0
    %584 = vmatpush2.msra.mxu0 0.0
    %585 = vmatprep.mubr.f32.mxu0 0.0
    %586 = vmatmul.mubr.f32.gmra.mxu0 %v520
    %v587 = vpop.f32.mrf.mxu0
    %v588 = vadd.f32 %v233, %v587
    %v589 = vpop.f32.mrf.mxu0
    %590 = vdwg.mxu0
    %v591 = vtanh.pop %v588
    %592 = vmatprep.subr.mxu0 0.0
    %593 = vmatpush1.msra.mxu0 %v106
    %594 = vmatprep.subr.mxu0 0.0
    %595 = vmatpush1.msra.mxu0 %v105
    %596 = vmatprep.subr.mxu0 0.0
    %597 = vmatpush1.msra.mxu0 %v104
    %598 = vmatprep.subr.mxu0 0.0
    %599 = vmatpush1.msra.mxu0 %v103
    %600 = vmatprep.subr.mxu0 0.0
    %601 = vmatpush1.msra.mxu0 %v102
    %602 = vmatprep.subr.mxu0 0.0
    %603 = vmatpush1.msra.mxu0 %v101
    %604 = vmatprep.subr.mxu0 0.0
    %605 = vmatpush1.msra.mxu0 %v100
    %606 = vmatprep.subr.mxu0 0.0
    %607 = vmatpush1.msra.mxu0 %v99
    %608 = vmatprep.subr.mxu0 0.0
    %609 = vmatpush1.msra.mxu0 %v98
    %610 = vmatprep.subr.mxu0 0.0
    %611 = vmatpush1.msra.mxu0 %v97
    %612 = vmatprep.subr.mxu0 0.0
    %613 = vmatpush1.msra.mxu0 %v96
    %614 = vmatprep.subr.mxu0 0.0
    %615 = vmatpush1.msra.mxu0 %v95
    %616 = vmatprep.subr.mxu0 0.0
    %617 = vmatpush1.msra.mxu0 %v94
    %618 = vmatprep.subr.mxu0 0.0
    %619 = vmatpush1.msra.mxu0 %v93
    %620 = vmatprep.subr.mxu0 0.0
    %621 = vmatpush1.msra.mxu0 %v92
    %622 = vmatprep.subr.mxu0 0.0
    %623 = vmatpush1.msra.mxu0 %v91
    %624 = vmatprep.subr.mxu0 0.0
    %625 = vmatpush2.msra.mxu0 0.0
    %626 = vmatprep.subr.mxu0 0.0
    %627 = vmatpush2.msra.mxu0 0.0
    %628 = vmatprep.subr.mxu0 0.0
    %629 = vmatpush2.msra.mxu0 0.0
    %630 = vmatprep.subr.mxu0 0.0
    %631 = vmatpush2.msra.mxu0 0.0
    %632 = vmatprep.subr.mxu0 0.0
    %633 = vmatpush2.msra.mxu0 0.0
    %634 = vmatprep.subr.mxu0 0.0
    %635 = vmatpush2.msra.mxu0 0.0
    %636 = vmatprep.subr.mxu0 0.0
    %637 = vmatpush2.msra.mxu0 0.0
    %638 = vmatprep.subr.mxu0 0.0
    %639 = vmatpush2.msra.mxu0 0.0
    %640 = vmatprep.subr.mxu0 0.0
    %641 = vmatpush2.msra.mxu0 0.0
    %642 = vmatprep.subr.mxu0 0.0
    %643 = vmatpush2.msra.mxu0 0.0
    %644 = vmatprep.subr.mxu0 0.0
    %645 = vmatpush2.msra.mxu0 0.0
    %646 = vmatprep.subr.mxu0 0.0
    %647 = vmatpush2.msra.mxu0 0.0
    %648 = vmatprep.subr.mxu0 0.0
    %649 = vmatpush2.msra.mxu0 0.0
    %650 = vmatprep.subr.mxu0 0.0
    %651 = vmatpush2.msra.mxu0 0.0
    %652 = vmatprep.subr.mxu0 0.0
    %653 = vmatpush2.msra.mxu0 0.0
    %654 = vmatprep.subr.mxu0 0.0
    %655 = vmatpush2.msra.mxu0 0.0
    %656 = vmatprep.mubr.f32.mxu0 0.0
    %657 = vmatmul.mubr.f32.gmra.mxu0 %v591
    %v658 = vpop.f32.mrf.mxu0
    %v659 = vadd.f32 %v238, %v658
    %v660 = vpop.f32.mrf.mxu0
    %661 = vdwg.mxu0
    %v662 = vtanh.pop %v659
    %663 = vmatprep.subr.mxu0 0.0
    %664 = vmatpush1.msra.mxu0 %v106
    %665 = vmatprep.subr.mxu0 0.0
    %666 = vmatpush1.msra.mxu0 %v105
    %667 = vmatprep.subr.mxu0 0.0
    %668 = vmatpush1.msra.mxu0 %v104
    %669 = vmatprep.subr.mxu0 0.0
    %670 = vmatpush1.msra.mxu0 %v103
    %671 = vmatprep.subr.mxu0 0.0
    %672 = vmatpush1.msra.mxu0 %v102
    %673 = vmatprep.subr.mxu0 0.0
    %674 = vmatpush1.msra.mxu0 %v101
    %675 = vmatprep.subr.mxu0 0.0
    %676 = vmatpush1.msra.mxu0 %v100
    %677 = vmatprep.subr.mxu0 0.0
    %678 = vmatpush1.msra.mxu0 %v99
    %679 = vmatprep.subr.mxu0 0.0
    %680 = vmatpush1.msra.mxu0 %v98
    %681 = vmatprep.subr.mxu0 0.0
    %682 = vmatpush1.msra.mxu0 %v97
    %683 = vmatprep.subr.mxu0 0.0
    %684 = vmatpush1.msra.mxu0 %v96
    %685 = vmatprep.subr.mxu0 0.0
    %686 = vmatpush1.msra.mxu0 %v95
    %687 = vmatprep.subr.mxu0 0.0
    %688 = vmatpush1.msra.mxu0 %v94
    %689 = vmatprep.subr.mxu0 0.0
    %690 = vmatpush1.msra.mxu0 %v93
    %691 = vmatprep.subr.mxu0 0.0
    %692 = vmatpush1.msra.mxu0 %v92
    %693 = vmatprep.subr.mxu0 0.0
    %694 = vmatpush1.msra.mxu0 %v91
    %695 = vmatprep.subr.mxu0 0.0
    %696 = vmatpush2.msra.mxu0 0.0
    %697 = vmatprep.subr.mxu0 0.0
    %698 = vmatpush2.msra.mxu0 0.0
    %699 = vmatprep.subr.mxu0 0.0
    %700 = vmatpush2.msra.mxu0 0.0
    %701 = vmatprep.subr.mxu0 0.0
    %702 = vmatpush2.msra.mxu0 0.0
    %703 = vmatprep.subr.mxu0 0.0
    %704 = vmatpush2.msra.mxu0 0.0
    %705 = vmatprep.subr.mxu0 0.0
    %706 = vmatpush2.msra.mxu0 0.0
    %707 = vmatprep.subr.mxu0 0.0
    %708 = vmatpush2.msra.mxu0 0.0
    %709 = vmatprep.subr.mxu0 0.0
    %710 = vmatpush2.msra.mxu0 0.0
    %711 = vmatprep.subr.mxu0 0.0
    %712 = vmatpush2.msra.mxu0 0.0
    %713 = vmatprep.subr.mxu0 0.0
    %714 = vmatpush2.msra.mxu0 0.0
    %715 = vmatprep.subr.mxu0 0.0
    %716 = vmatpush2.msra.mxu0 0.0
    %717 = vmatprep.subr.mxu0 0.0
    %718 = vmatpush2.msra.mxu0 0.0
    %719 = vmatprep.subr.mxu0 0.0
    %720 = vmatpush2.msra.mxu0 0.0
    %721 = vmatprep.subr.mxu0 0.0
    %722 = vmatpush2.msra.mxu0 0.0
    %723 = vmatprep.subr.mxu0 0.0
    %724 = vmatpush2.msra.mxu0 0.0
    %725 = vmatprep.subr.mxu0 0.0
    %726 = vmatpush2.msra.mxu0 0.0
    %727 = vmatprep.mubr.f32.mxu0 0.0
    %728 = vmatmul.mubr.f32.gmra.mxu0 %v662
    %v729 = vpop.f32.mrf.mxu0
    %v730 = vadd.f32 %v243, %v729
    %v731 = vpop.f32.mrf.mxu0
    %732 = vdwg.mxu0
    %v733 = vtanh.pop %v730
    %734 = vmatprep.subr.mxu0 0.0
    %735 = vmatpush1.msra.mxu0 %v106
    %736 = vmatprep.subr.mxu0 0.0
    %737 = vmatpush1.msra.mxu0 %v105
    %738 = vmatprep.subr.mxu0 0.0
    %739 = vmatpush1.msra.mxu0 %v104
    %740 = vmatprep.subr.mxu0 0.0
    %741 = vmatpush1.msra.mxu0 %v103
    %742 = vmatprep.subr.mxu0 0.0
    %743 = vmatpush1.msra.mxu0 %v102
    %744 = vmatprep.subr.mxu0 0.0
    %745 = vmatpush1.msra.mxu0 %v101
    %746 = vmatprep.subr.mxu0 0.0
    %747 = vmatpush1.msra.mxu0 %v100
    %748 = vmatprep.subr.mxu0 0.0
    %749 = vmatpush1.msra.mxu0 %v99
    %750 = vmatprep.subr.mxu0 0.0
    %751 = vmatpush1.msra.mxu0 %v98
    %752 = vmatprep.subr.mxu0 0.0
    %753 = vmatpush1.msra.mxu0 %v97
    %754 = vmatprep.subr.mxu0 0.0
    %755 = vmatpush1.msra.mxu0 %v96
    %756 = vmatprep.subr.mxu0 0.0
    %757 = vmatpush1.msra.mxu0 %v95
    %758 = vmatprep.subr.mxu0 0.0
    %759 = vmatpush1.msra.mxu0 %v94
    %760 = vmatprep.subr.mxu0 0.0
    %761 = vmatpush1.msra.mxu0 %v93
    %762 = vmatprep.subr.mxu0 0.0
    %763 = vmatpush1.msra.mxu0 %v92
    %764 = vmatprep.subr.mxu0 0.0
    %765 = vmatpush1.msra.mxu0 %v91
    %766 = vmatprep.subr.mxu0 0.0
    %767 = vmatpush2.msra.mxu0 0.0
    %768 = vmatprep.subr.mxu0 0.0
    %769 = vmatpush2.msra.mxu0 0.0
    %770 = vmatprep.subr.mxu0 0.0
    %771 = vmatpush2.msra.mxu0 0.0
    %772 = vmatprep.subr.mxu0 0.0
    %773 = vmatpush2.msra.mxu0 0.0
    %774 = vmatprep.subr.mxu0 0.0
    %775 = vmatpush2.msra.mxu0 0.0
    %776 = vmatprep.subr.mxu0 0.0
    %777 = vmatpush2.msra.mxu0 0.0
    %778 = vmatprep.subr.mxu0 0.0
    %779 = vmatpush2.msra.mxu0 0.0
    %780 = vmatprep.subr.mxu0 0.0
    %781 = vmatpush2.msra.mxu0 0.0
    %782 = vmatprep.subr.mxu0 0.0
    %783 = vmatpush2.msra.mxu0 0.0
    %784 = vmatprep.subr.mxu0 0.0
    %785 = vmatpush2.msra.mxu0 0.0
    %786 = vmatprep.subr.mxu0 0.0
    %787 = vmatpush2.msra.mxu0 0.0
    %788 = vmatprep.subr.mxu0 0.0
    %789 = vmatpush2.msra.mxu0 0.0
    %790 = vmatprep.subr.mxu0 0.0
    %791 = vmatpush2.msra.mxu0 0.0
    %792 = vmatprep.subr.mxu0 0.0
    %793 = vmatpush2.msra.mxu0 0.0
    %794 = vmatprep.subr.mxu0 0.0
    %795 = vmatpush2.msra.mxu0 0.0
    %796 = vmatprep.subr.mxu0 0.0
    %797 = vmatpush2.msra.mxu0 0.0
    %798 = vmatprep.mubr.f32.mxu0 0.0
    %799 = vmatmul.mubr.f32.gmra.mxu0 %v733
    %v800 = vpop.f32.mrf.mxu0
    %v801 = vadd.f32 %v248, %v800
    %v802 = vpop.f32.mrf.mxu0
    %803 = vdwg.mxu0
    %v804 = vtanh.pop %v801
    %805 = vmatprep.subr.mxu0 0.0
    %806 = vmatpush1.msra.mxu0 %v106
    %807 = vmatprep.subr.mxu0 0.0
    %808 = vmatpush1.msra.mxu0 %v105
    %809 = vmatprep.subr.mxu0 0.0
    %810 = vmatpush1.msra.mxu0 %v104
    %811 = vmatprep.subr.mxu0 0.0
    %812 = vmatpush1.msra.mxu0 %v103
    %813 = vmatprep.subr.mxu0 0.0
    %814 = vmatpush1.msra.mxu0 %v102
    %815 = vmatprep.subr.mxu0 0.0
    %816 = vmatpush1.msra.mxu0 %v101
    %817 = vmatprep.subr.mxu0 0.0
    %818 = vmatpush1.msra.mxu0 %v100
    %819 = vmatprep.subr.mxu0 0.0
    %820 = vmatpush1.msra.mxu0 %v99
    %821 = vmatprep.subr.mxu0 0.0
    %822 = vmatpush1.msra.mxu0 %v98
    %823 = vmatprep.subr.mxu0 0.0
    %824 = vmatpush1.msra.mxu0 %v97
    %825 = vmatprep.subr.mxu0 0.0
    %826 = vmatpush1.msra.mxu0 %v96
    %827 = vmatprep.subr.mxu0 0.0
    %828 = vmatpush1.msra.mxu0 %v95
    %829 = vmatprep.subr.mxu0 0.0
    %830 = vmatpush1.msra.mxu0 %v94
    %831 = vmatprep.subr.mxu0 0.0
    %832 = vmatpush1.msra.mxu0 %v93
    %833 = vmatprep.subr.mxu0 0.0
    %834 = vmatpush1.msra.mxu0 %v92
    %835 = vmatprep.subr.mxu0 0.0
    %836 = vmatpush1.msra.mxu0 %v91
    %837 = vmatprep.subr.mxu0 0.0
    %838 = vmatpush2.msra.mxu0 0.0
    %839 = vmatprep.subr.mxu0 0.0
    %840 = vmatpush2.msra.mxu0 0.0
    %841 = vmatprep.subr.mxu0 0.0
    %842 = vmatpush2.msra.mxu0 0.0
    %843 = vmatprep.subr.mxu0 0.0
    %844 = vmatpush2.msra.mxu0 0.0
    %845 = vmatprep.subr.mxu0 0.0
    %846 = vmatpush2.msra.mxu0 0.0
    %847 = vmatprep.subr.mxu0 0.0
    %848 = vmatpush2.msra.mxu0 0.0
    %849 = vmatprep.subr.mxu0 0.0
    %850 = vmatpush2.msra.mxu0 0.0
    %851 = vmatprep.subr.mxu0 0.0
    %852 = vmatpush2.msra.mxu0 0.0
    %853 = vmatprep.subr.mxu0 0.0
    %854 = vmatpush2.msra.mxu0 0.0
    %855 = vmatprep.subr.mxu0 0.0
    %856 = vmatpush2.msra.mxu0 0.0
    %857 = vmatprep.subr.mxu0 0.0
    %858 = vmatpush2.msra.mxu0 0.0
    %859 = vmatprep.subr.mxu0 0.0
    %860 = vmatpush2.msra.mxu0 0.0
    %861 = vmatprep.subr.mxu0 0.0
    %862 = vmatpush2.msra.mxu0 0.0
    %863 = vmatprep.subr.mxu0 0.0
    %864 = vmatpush2.msra.mxu0 0.0
    %865 = vmatprep.subr.mxu0 0.0
    %866 = vmatpush2.msra.mxu0 0.0
    %867 = vmatprep.subr.mxu0 0.0
    %868 = vmatpush2.msra.mxu0 0.0
    %869 = vmatprep.mubr.f32.mxu0 0.0
    %870 = vmatmul.mubr.f32.gmra.mxu0 %v804
    %v871 = vpop.f32.mrf.mxu0
    %v872 = vadd.f32 %v253, %v871
    %v873 = vpop.f32.mrf.mxu0
    %874 = vdwg.mxu0
    %v875 = vtanh.pop %v872
    %876 = vmatprep.subr.mxu0 0.0
    %877 = vmatpush1.msra.mxu0 %v106
    %878 = vmatprep.subr.mxu0 0.0
    %879 = vmatpush1.msra.mxu0 %v105
    %880 = vmatprep.subr.mxu0 0.0
    %881 = vmatpush1.msra.mxu0 %v104
    %882 = vmatprep.subr.mxu0 0.0
    %883 = vmatpush1.msra.mxu0 %v103
    %884 = vmatprep.subr.mxu0 0.0
    %885 = vmatpush1.msra.mxu0 %v102
    %886 = vmatprep.subr.mxu0 0.0
    %887 = vmatpush1.msra.mxu0 %v101
    %888 = vmatprep.subr.mxu0 0.0
    %889 = vmatpush1.msra.mxu0 %v100
    %890 = vmatprep.subr.mxu0 0.0
    %891 = vmatpush1.msra.mxu0 %v99
    %892 = vmatprep.subr.mxu0 0.0
    %893 = vmatpush1.msra.mxu0 %v98
    %894 = vmatprep.subr.mxu0 0.0
    %895 = vmatpush1.msra.mxu0 %v97
    %896 = vmatprep.subr.mxu0 0.0
    %897 = vmatpush1.msra.mxu0 %v96
    %898 = vmatprep.subr.mxu0 0.0
    %899 = vmatpush1.msra.mxu0 %v95
    %900 = vmatprep.subr.mxu0 0.0
    %901 = vmatpush1.msra.mxu0 %v94
    %902 = vmatprep.subr.mxu0 0.0
    %903 = vmatpush1.msra.mxu0 %v93
    %904 = vmatprep.subr.mxu0 0.0
    %905 = vmatpush1.msra.mxu0 %v92
    %906 = vmatprep.subr.mxu0 0.0
    %907 = vmatpush1.msra.mxu0 %v91
    %908 = vmatprep.subr.mxu0 0.0
    %909 = vmatpush2.msra.mxu0 0.0
    %910 = vmatprep.subr.mxu0 0.0
    %911 = vmatpush2.msra.mxu0 0.0
    %912 = vmatprep.subr.mxu0 0.0
    %913 = vmatpush2.msra.mxu0 0.0
    %914 = vmatprep.subr.mxu0 0.0
    %915 = vmatpush2.msra.mxu0 0.0
    %916 = vmatprep.subr.mxu0 0.0
    %917 = vmatpush2.msra.mxu0 0.0
    %918 = vmatprep.subr.mxu0 0.0
    %919 = vmatpush2.msra.mxu0 0.0
    %920 = vmatprep.subr.mxu0 0.0
    %921 = vmatpush2.msra.mxu0 0.0
    %922 = vmatprep.subr.mxu0 0.0
    %923 = vmatpush2.msra.mxu0 0.0
    %924 = vmatprep.subr.mxu0 0.0
    %925 = vmatpush2.msra.mxu0 0.0
    %926 = vmatprep.subr.mxu0 0.0
    %927 = vmatpush2.msra.mxu0 0.0
    %928 = vmatprep.subr.mxu0 0.0
    %929 = vmatpush2.msra.mxu0 0.0
    %930 = vmatprep.subr.mxu0 0.0
    %931 = vmatpush2.msra.mxu0 0.0
    %932 = vmatprep.subr.mxu0 0.0
    %933 = vmatpush2.msra.mxu0 0.0
    %934 = vmatprep.subr.mxu0 0.0
    %935 = vmatpush2.msra.mxu0 0.0
    %936 = vmatprep.subr.mxu0 0.0
    %937 = vmatpush2.msra.mxu0 0.0
    %938 = vmatprep.subr.mxu0 0.0
    %939 = vmatpush2.msra.mxu0 0.0
    %940 = vmatprep.mubr.f32.mxu0 0.0
    %941 = vmatmul.mubr.f32.gmra.mxu0 %v875
    %v942 = vpop.f32.mrf.mxu0
    %v943 = vadd.f32 %v258, %v942
    %v944 = vpop.f32.mrf.mxu0
    %945 = vdwg.mxu0
    %v946 = vtanh.pop %v943
    %947 = vmatprep.subr.mxu0 0.0
    %948 = vmatpush1.msra.mxu0 %v123
    %949 = vmatprep.subr.mxu0 0.0
    %950 = vmatpush1.msra.mxu0 %v122
    %951 = vmatprep.subr.mxu0 0.0
    %952 = vmatpush1.msra.mxu0 %v121
    %953 = vmatprep.subr.mxu0 0.0
    %954 = vmatpush1.msra.mxu0 %v120
    %955 = vmatprep.subr.mxu0 0.0
    %956 = vmatpush1.msra.mxu0 %v119
    %957 = vmatprep.subr.mxu0 0.0
    %958 = vmatpush1.msra.mxu0 %v118
    %959 = vmatprep.subr.mxu0 0.0
    %960 = vmatpush1.msra.mxu0 %v117
    %961 = vmatprep.subr.mxu0 0.0
    %962 = vmatpush1.msra.mxu0 %v116
    %963 = vmatprep.subr.mxu0 0.0
    %964 = vmatpush1.msra.mxu0 %v115
    %965 = vmatprep.subr.mxu0 0.0
    %966 = vmatpush1.msra.mxu0 %v114
    %967 = vmatprep.subr.mxu0 0.0
    %968 = vmatpush1.msra.mxu0 %v113
    %969 = vmatprep.subr.mxu0 0.0
    %970 = vmatpush1.msra.mxu0 %v112
    %971 = vmatprep.subr.mxu0 0.0
    %972 = vmatpush1.msra.mxu0 %v111
    %973 = vmatprep.subr.mxu0 0.0
    %974 = vmatpush1.msra.mxu0 %v110
    %975 = vmatprep.subr.mxu0 0.0
    %976 = vmatpush1.msra.mxu0 %v109
    %977 = vmatprep.subr.mxu0 0.0
    %978 = vmatpush1.msra.mxu0 %v108
    %979 = vmatprep.subr.mxu0 0.0
    %980 = vmatpush2.msra.mxu0 0.0
    %981 = vmatprep.subr.mxu0 0.0
    %982 = vmatpush2.msra.mxu0 0.0
    %983 = vmatprep.subr.mxu0 0.0
    %984 = vmatpush2.msra.mxu0 0.0
    %985 = vmatprep.subr.mxu0 0.0
    %986 = vmatpush2.msra.mxu0 0.0
    %987 = vmatprep.subr.mxu0 0.0
    %988 = vmatpush2.msra.mxu0 0.0
    %989 = vmatprep.subr.mxu0 0.0
    %990 = vmatpush2.msra.mxu0 0.0
    %991 = vmatprep.subr.mxu0 0.0
    %992 = vmatpush2.msra.mxu0 0.0
    %993 = vmatprep.subr.mxu0 0.0
    %994 = vmatpush2.msra.mxu0 0.0
    %995 = vmatprep.subr.mxu0 0.0
    %996 = vmatpush2.msra.mxu0 0.0
    %997 = vmatprep.subr.mxu0 0.0
    %998 = vmatpush2.msra.mxu0 0.0
    %999 = vmatprep.subr.mxu0 0.0
    %1000 = vmatpush2.msra.mxu0 0.0
    %1001 = vmatprep.subr.mxu0 0.0
    %1002 = vmatpush2.msra.mxu0 0.0
    %1003 = vmatprep.subr.mxu0 0.0
    %1004 = vmatpush2.msra.mxu0 0.0
    %1005 = vmatprep.subr.mxu0 0.0
    %1006 = vmatpush2.msra.mxu0 0.0
    %1007 = vmatprep.subr.mxu0 0.0
    %1008 = vmatpush2.msra.mxu0 0.0
    %1009 = vmatprep.subr.mxu0 0.0
    %1010 = vmatpush2.msra.mxu0 0.0
    %1011 = vmatprep.mubr.f32.mxu0 0.0
    %1012 = vmatmul.mubr.f32.gmra.mxu0 %v946
    %v1013 = vpop.f32.mrf.mxu0
    %v1014 = vadd.f32 %v340, %v1013
    %v1015 = vpop.f32.mrf.mxu0
    %1016 = vdwg.mxu0
    %v1017 = vtanh.pop %v1014
    %1018 = vst [vmem:[#allocation2] sm:$0xff] %v1017
    %1019 = vmatprep.subr.mxu0 0.0
    %1020 = vmatpush1.msra.mxu0 %v123
    %1021 = vmatprep.subr.mxu0 0.0
    %1022 = vmatpush1.msra.mxu0 %v122
    %1023 = vmatprep.subr.mxu0 0.0
    %1024 = vmatpush1.msra.mxu0 %v121
    %1025 = vmatprep.subr.mxu0 0.0
    %1026 = vmatpush1.msra.mxu0 %v120
    %1027 = vmatprep.subr.mxu0 0.0
    %1028 = vmatpush1.msra.mxu0 %v119
    %1029 = vmatprep.subr.mxu0 0.0
    %1030 = vmatpush1.msra.mxu0 %v118
    %1031 = vmatprep.subr.mxu0 0.0
    %1032 = vmatpush1.msra.mxu0 %v117
    %1033 = vmatprep.subr.mxu0 0.0
    %1034 = vmatpush1.msra.mxu0 %v116
    %1035 = vmatprep.subr.mxu0 0.0
    %1036 = vmatpush1.msra.mxu0 %v115
    %1037 = vmatprep.subr.mxu0 0.0
    %1038 = vmatpush1.msra.mxu0 %v114
    %1039 = vmatprep.subr.mxu0 0.0
    %1040 = vmatpush1.msra.mxu0 %v113
    %1041 = vmatprep.subr.mxu0 0.0
    %1042 = vmatpush1.msra.mxu0 %v112
    %1043 = vmatprep.subr.mxu0 0.0
    %1044 = vmatpush1.msra.mxu0 %v111
    %1045 = vmatprep.subr.mxu0 0.0
    %1046 = vmatpush1.msra.mxu0 %v110
    %1047 = vmatprep.subr.mxu0 0.0
    %1048 = vmatpush1.msra.mxu0 %v109
    %1049 = vmatprep.subr.mxu0 0.0
    %1050 = vmatpush1.msra.mxu0 %v108
    %1051 = vmatprep.subr.mxu0 0.0
    %1052 = vmatpush2.msra.mxu0 0.0
    %1053 = vmatprep.subr.mxu0 0.0
    %1054 = vmatpush2.msra.mxu0 0.0
    %1055 = vmatprep.subr.mxu0 0.0
    %1056 = vmatpush2.msra.mxu0 0.0
    %1057 = vmatprep.subr.mxu0 0.0
    %1058 = vmatpush2.msra.mxu0 0.0
    %1059 = vmatprep.subr.mxu0 0.0
    %1060 = vmatpush2.msra.mxu0 0.0
    %1061 = vmatprep.subr.mxu0 0.0
    %1062 = vmatpush2.msra.mxu0 0.0
    %1063 = vmatprep.subr.mxu0 0.0
    %1064 = vmatpush2.msra.mxu0 0.0
    %1065 = vmatprep.subr.mxu0 0.0
    %1066 = vmatpush2.msra.mxu0 0.0
    %1067 = vmatprep.subr.mxu0 0.0
    %1068 = vmatpush2.msra.mxu0 0.0
    %1069 = vmatprep.subr.mxu0 0.0
    %1070 = vmatpush2.msra.mxu0 0.0
    %1071 = vmatprep.subr.mxu0 0.0
    %1072 = vmatpush2.msra.mxu0 0.0
    %1073 = vmatprep.subr.mxu0 0.0
    %1074 = vmatpush2.msra.mxu0 0.0
    %1075 = vmatprep.subr.mxu0 0.0
    %1076 = vmatpush2.msra.mxu0 0.0
    %1077 = vmatprep.subr.mxu0 0.0
    %1078 = vmatpush2.msra.mxu0 0.0
    %1079 = vmatprep.subr.mxu0 0.0
    %1080 = vmatpush2.msra.mxu0 0.0
    %1081 = vmatprep.subr.mxu0 0.0
    %1082 = vmatpush2.msra.mxu0 0.0
    %1083 = vmatprep.mubr.f32.mxu0 0.0
    %1084 = vmatmul.mubr.f32.gmra.mxu0 %v1017
    %v1085 = vpop.f32.mrf.mxu0
    %v1086 = vadd.f32 %v345, %v1085
    %v1087 = vpop.f32.mrf.mxu0
    %1088 = vdwg.mxu0
    %v1089 = vtanh.pop %v1086
    %1090 = vst [vmem:[#allocation2 + $0x8] sm:$0xff] %v1089
    %1091 = vmatprep.subr.mxu0 0.0
    %1092 = vmatpush1.msra.mxu0 %v123
    %1093 = vmatprep.subr.mxu0 0.0
    %1094 = vmatpush1.msra.mxu0 %v122
    %1095 = vmatprep.subr.mxu0 0.0
    %1096 = vmatpush1.msra.mxu0 %v121
    %1097 = vmatprep.subr.mxu0 0.0
    %1098 = vmatpush1.msra.mxu0 %v120
    %1099 = vmatprep.subr.mxu0 0.0
    %1100 = vmatpush1.msra.mxu0 %v119
    %1101 = vmatprep.subr.mxu0 0.0
    %1102 = vmatpush1.msra.mxu0 %v118
    %1103 = vmatprep.subr.mxu0 0.0
    %1104 = vmatpush1.msra.mxu0 %v117
    %1105 = vmatprep.subr.mxu0 0.0
    %1106 = vmatpush1.msra.mxu0 %v116
    %1107 = vmatprep.subr.mxu0 0.0
    %1108 = vmatpush1.msra.mxu0 %v115
    %1109 = vmatprep.subr.mxu0 0.0
    %1110 = vmatpush1.msra.mxu0 %v114
    %1111 = vmatprep.subr.mxu0 0.0
    %1112 = vmatpush1.msra.mxu0 %v113
    %1113 = vmatprep.subr.mxu0 0.0
    %1114 = vmatpush1.msra.mxu0 %v112
    %1115 = vmatprep.subr.mxu0 0.0
    %1116 = vmatpush1.msra.mxu0 %v111
    %1117 = vmatprep.subr.mxu0 0.0
    %1118 = vmatpush1.msra.mxu0 %v110
    %1119 = vmatprep.subr.mxu0 0.0
    %1120 = vmatpush1.msra.mxu0 %v109
    %1121 = vmatprep.subr.mxu0 0.0
    %1122 = vmatpush1.msra.mxu0 %v108
    %1123 = vmatprep.subr.mxu0 0.0
    %1124 = vmatpush2.msra.mxu0 0.0
    %1125 = vmatprep.subr.mxu0 0.0
    %1126 = vmatpush2.msra.mxu0 0.0
    %1127 = vmatprep.subr.mxu0 0.0
    %1128 = vmatpush2.msra.mxu0 0.0
    %1129 = vmatprep.subr.mxu0 0.0
    %1130 = vmatpush2.msra.mxu0 0.0
    %1131 = vmatprep.subr.mxu0 0.0
    %1132 = vmatpush2.msra.mxu0 0.0
    %1133 = vmatprep.subr.mxu0 0.0
    %1134 = vmatpush2.msra.mxu0 0.0
    %1135 = vmatprep.subr.mxu0 0.0
    %1136 = vmatpush2.msra.mxu0 0.0
    %1137 = vmatprep.subr.mxu0 0.0
    %1138 = vmatpush2.msra.mxu0 0.0
    %1139 = vmatprep.subr.mxu0 0.0
    %1140 = vmatpush2.msra.mxu0 0.0
    %1141 = vmatprep.subr.mxu0 0.0
    %1142 = vmatpush2.msra.mxu0 0.0
    %1143 = vmatprep.subr.mxu0 0.0
    %1144 = vmatpush2.msra.mxu0 0.0
    %1145 = vmatprep.subr.mxu0 0.0
    %1146 = vmatpush2.msra.mxu0 0.0
    %1147 = vmatprep.subr.mxu0 0.0
    %1148 = vmatpush2.msra.mxu0 0.0
    %1149 = vmatprep.subr.mxu0 0.0
    %1150 = vmatpush2.msra.mxu0 0.0
    %1151 = vmatprep.subr.mxu0 0.0
    %1152 = vmatpush2.msra.mxu0 0.0
    %1153 = vmatprep.subr.mxu0 0.0
    %1154 = vmatpush2.msra.mxu0 0.0
    %1155 = vmatprep.mubr.f32.mxu0 0.0
    %1156 = vmatmul.mubr.f32.gmra.mxu0 %v1089
    %v1157 = vpop.f32.mrf.mxu0
    %v1158 = vadd.f32 %v350, %v1157
    %v1159 = vpop.f32.mrf.mxu0
    %1160 = vdwg.mxu0
    %v1161 = vtanh.pop %v1158
    %1162 = vst [vmem:[#allocation2 + $0x10] sm:$0xff] %v1161
    %1163 = vmatprep.subr.mxu0 0.0
    %1164 = vmatpush1.msra.mxu0 %v123
    %1165 = vmatprep.subr.mxu0 0.0
    %1166 = vmatpush1.msra.mxu0 %v122
    %1167 = vmatprep.subr.mxu0 0.0
    %1168 = vmatpush1.msra.mxu0 %v121
    %1169 = vmatprep.subr.mxu0 0.0
    %1170 = vmatpush1.msra.mxu0 %v120
    %1171 = vmatprep.subr.mxu0 0.0
    %1172 = vmatpush1.msra.mxu0 %v119
    %1173 = vmatprep.subr.mxu0 0.0
    %1174 = vmatpush1.msra.mxu0 %v118
    %1175 = vmatprep.subr.mxu0 0.0
    %1176 = vmatpush1.msra.mxu0 %v117
    %1177 = vmatprep.subr.mxu0 0.0
    %1178 = vmatpush1.msra.mxu0 %v116
    %1179 = vmatprep.subr.mxu0 0.0
    %1180 = vmatpush1.msra.mxu0 %v115
    %1181 = vmatprep.subr.mxu0 0.0
    %1182 = vmatpush1.msra.mxu0 %v114
    %1183 = vmatprep.subr.mxu0 0.0
    %1184 = vmatpush1.msra.mxu0 %v113
    %1185 = vmatprep.subr.mxu0 0.0
    %1186 = vmatpush1.msra.mxu0 %v112
    %1187 = vmatprep.subr.mxu0 0.0
    %1188 = vmatpush1.msra.mxu0 %v111
    %1189 = vmatprep.subr.mxu0 0.0
    %1190 = vmatpush1.msra.mxu0 %v110
    %1191 = vmatprep.subr.mxu0 0.0
    %1192 = vmatpush1.msra.mxu0 %v109
    %1193 = vmatprep.subr.mxu0 0.0
    %1194 = vmatpush1.msra.mxu0 %v108
    %1195 = vmatprep.subr.mxu0 0.0
    %1196 = vmatpush2.msra.mxu0 0.0
    %1197 = vmatprep.subr.mxu0 0.0
    %1198 = vmatpush2.msra.mxu0 0.0
    %1199 = vmatprep.subr.mxu0 0.0
    %1200 = vmatpush2.msra.mxu0 0.0
    %1201 = vmatprep.subr.mxu0 0.0
    %1202 = vmatpush2.msra.mxu0 0.0
    %1203 = vmatprep.subr.mxu0 0.0
    %1204 = vmatpush2.msra.mxu0 0.0
    %1205 = vmatprep.subr.mxu0 0.0
    %1206 = vmatpush2.msra.mxu0 0.0
    %1207 = vmatprep.subr.mxu0 0.0
    %1208 = vmatpush2.msra.mxu0 0.0
    %1209 = vmatprep.subr.mxu0 0.0
    %1210 = vmatpush2.msra.mxu0 0.0
    %1211 = vmatprep.subr.mxu0 0.0
    %1212 = vmatpush2.msra.mxu0 0.0
    %1213 = vmatprep.subr.mxu0 0.0
    %1214 = vmatpush2.msra.mxu0 0.0
    %1215 = vmatprep.subr.mxu0 0.0
    %1216 = vmatpush2.msra.mxu0 0.0
    %1217 = vmatprep.subr.mxu0 0.0
    %1218 = vmatpush2.msra.mxu0 0.0
    %1219 = vmatprep.subr.mxu0 0.0
    %1220 = vmatpush2.msra.mxu0 0.0
    %1221 = vmatprep.subr.mxu0 0.0
    %1222 = vmatpush2.msra.mxu0 0.0
    %1223 = vmatprep.subr.mxu0 0.0
    %1224 = vmatpush2.msra.mxu0 0.0
    %1225 = vmatprep.subr.mxu0 0.0
    %1226 = vmatpush2.msra.mxu0 0.0
    %1227 = vmatprep.mubr.f32.mxu0 0.0
    %1228 = vmatmul.mubr.f32.gmra.mxu0 %v1161
    %v1229 = vpop.f32.mrf.mxu0
    %v1230 = vadd.f32 %v355, %v1229
    %v1231 = vpop.f32.mrf.mxu0
    %1232 = vdwg.mxu0
    %v1233 = vtanh.pop %v1230
    %1234 = vst [vmem:[#allocation2 + $0x18] sm:$0xff] %v1233
    %1235 = vmatprep.subr.mxu0 0.0
    %1236 = vmatpush1.msra.mxu0 %v123
    %1237 = vmatprep.subr.mxu0 0.0
    %1238 = vmatpush1.msra.mxu0 %v122
    %1239 = vmatprep.subr.mxu0 0.0
    %1240 = vmatpush1.msra.mxu0 %v121
    %1241 = vmatprep.subr.mxu0 0.0
    %1242 = vmatpush1.msra.mxu0 %v120
    %1243 = vmatprep.subr.mxu0 0.0
    %1244 = vmatpush1.msra.mxu0 %v119
    %1245 = vmatprep.subr.mxu0 0.0
    %1246 = vmatpush1.msra.mxu0 %v118
    %1247 = vmatprep.subr.mxu0 0.0
    %1248 = vmatpush1.msra.mxu0 %v117
    %1249 = vmatprep.subr.mxu0 0.0
    %1250 = vmatpush1.msra.mxu0 %v116
    %1251 = vmatprep.subr.mxu0 0.0
    %1252 = vmatpush1.msra.mxu0 %v115
    %1253 = vmatprep.subr.mxu0 0.0
    %1254 = vmatpush1.msra.mxu0 %v114
    %1255 = vmatprep.subr.mxu0 0.0
    %1256 = vmatpush1.msra.mxu0 %v113
    %1257 = vmatprep.subr.mxu0 0.0
    %1258 = vmatpush1.msra.mxu0 %v112
    %1259 = vmatprep.subr.mxu0 0.0
    %1260 = vmatpush1.msra.mxu0 %v111
    %1261 = vmatprep.subr.mxu0 0.0
    %1262 = vmatpush1.msra.mxu0 %v110
    %1263 = vmatprep.subr.mxu0 0.0
    %1264 = vmatpush1.msra.mxu0 %v109
    %1265 = vmatprep.subr.mxu0 0.0
    %1266 = vmatpush1.msra.mxu0 %v108
    %1267 = vmatprep.subr.mxu0 0.0
    %1268 = vmatpush2.msra.mxu0 0.0
    %1269 = vmatprep.subr.mxu0 0.0
    %1270 = vmatpush2.msra.mxu0 0.0
    %1271 = vmatprep.subr.mxu0 0.0
    %1272 = vmatpush2.msra.mxu0 0.0
    %1273 = vmatprep.subr.mxu0 0.0
    %1274 = vmatpush2.msra.mxu0 0.0
    %1275 = vmatprep.subr.mxu0 0.0
    %1276 = vmatpush2.msra.mxu0 0.0
    %1277 = vmatprep.subr.mxu0 0.0
    %1278 = vmatpush2.msra.mxu0 0.0
    %1279 = vmatprep.subr.mxu0 0.0
    %1280 = vmatpush2.msra.mxu0 0.0
    %1281 = vmatprep.subr.mxu0 0.0
    %1282 = vmatpush2.msra.mxu0 0.0
    %1283 = vmatprep.subr.mxu0 0.0
    %1284 = vmatpush2.msra.mxu0 0.0
    %1285 = vmatprep.subr.mxu0 0.0
    %1286 = vmatpush2.msra.mxu0 0.0
    %1287 = vmatprep.subr.mxu0 0.0
    %1288 = vmatpush2.msra.mxu0 0.0
    %1289 = vmatprep.subr.mxu0 0.0
    %1290 = vmatpush2.msra.mxu0 0.0
    %1291 = vmatprep.subr.mxu0 0.0
    %1292 = vmatpush2.msra.mxu0 0.0
    %1293 = vmatprep.subr.mxu0 0.0
    %1294 = vmatpush2.msra.mxu0 0.0
    %1295 = vmatprep.subr.mxu0 0.0
    %1296 = vmatpush2.msra.mxu0 0.0
    %1297 = vmatprep.subr.mxu0 0.0
    %1298 = vmatpush2.msra.mxu0 0.0
    %1299 = vmatprep.mubr.f32.mxu0 0.0
    %1300 = vmatmul.mubr.f32.gmra.mxu0 %v1233
    %v1301 = vpop.f32.mrf.mxu0
    %v1302 = vadd.f32 %v360, %v1301
    %v1303 = vpop.f32.mrf.mxu0
    %1304 = vdwg.mxu0
    %v1305 = vtanh.pop %v1302
    %1306 = vst [vmem:[#allocation2 + $0x20] sm:$0xff] %v1305
    %1307 = vmatprep.subr.mxu0 0.0
    %1308 = vmatpush1.msra.mxu0 %v123
    %1309 = vmatprep.subr.mxu0 0.0
    %1310 = vmatpush1.msra.mxu0 %v122
    %1311 = vmatprep.subr.mxu0 0.0
    %1312 = vmatpush1.msra.mxu0 %v121
    %1313 = vmatprep.subr.mxu0 0.0
    %1314 = vmatpush1.msra.mxu0 %v120
    %1315 = vmatprep.subr.mxu0 0.0
    %1316 = vmatpush1.msra.mxu0 %v119
    %1317 = vmatprep.subr.mxu0 0.0
    %1318 = vmatpush1.msra.mxu0 %v118
    %1319 = vmatprep.subr.mxu0 0.0
    %1320 = vmatpush1.msra.mxu0 %v117
    %1321 = vmatprep.subr.mxu0 0.0
    %1322 = vmatpush1.msra.mxu0 %v116
    %1323 = vmatprep.subr.mxu0 0.0
    %1324 = vmatpush1.msra.mxu0 %v115
    %1325 = vmatprep.subr.mxu0 0.0
    %1326 = vmatpush1.msra.mxu0 %v114
    %1327 = vmatprep.subr.mxu0 0.0
    %1328 = vmatpush1.msra.mxu0 %v113
    %1329 = vmatprep.subr.mxu0 0.0
    %1330 = vmatpush1.msra.mxu0 %v112
    %1331 = vmatprep.subr.mxu0 0.0
    %1332 = vmatpush1.msra.mxu0 %v111
    %1333 = vmatprep.subr.mxu0 0.0
    %1334 = vmatpush1.msra.mxu0 %v110
    %1335 = vmatprep.subr.mxu0 0.0
    %1336 = vmatpush1.msra.mxu0 %v109
    %1337 = vmatprep.subr.mxu0 0.0
    %1338 = vmatpush1.msra.mxu0 %v108
    %1339 = vmatprep.subr.mxu0 0.0
    %1340 = vmatpush2.msra.mxu0 0.0
    %1341 = vmatprep.subr.mxu0 0.0
    %1342 = vmatpush2.msra.mxu0 0.0
    %1343 = vmatprep.subr.mxu0 0.0
    %1344 = vmatpush2.msra.mxu0 0.0
    %1345 = vmatprep.subr.mxu0 0.0
    %1346 = vmatpush2.msra.mxu0 0.0
    %1347 = vmatprep.subr.mxu0 0.0
    %1348 = vmatpush2.msra.mxu0 0.0
    %1349 = vmatprep.subr.mxu0 0.0
    %1350 = vmatpush2.msra.mxu0 0.0
    %1351 = vmatprep.subr.mxu0 0.0
    %1352 = vmatpush2.msra.mxu0 0.0
    %1353 = vmatprep.subr.mxu0 0.0
    %1354 = vmatpush2.msra.mxu0 0.0
    %1355 = vmatprep.subr.mxu0 0.0
    %1356 = vmatpush2.msra.mxu0 0.0
    %1357 = vmatprep.subr.mxu0 0.0
    %1358 = vmatpush2.msra.mxu0 0.0
    %1359 = vmatprep.subr.mxu0 0.0
    %1360 = vmatpush2.msra.mxu0 0.0
    %1361 = vmatprep.subr.mxu0 0.0
    %1362 = vmatpush2.msra.mxu0 0.0
    %1363 = vmatprep.subr.mxu0 0.0
    %1364 = vmatpush2.msra.mxu0 0.0
    %1365 = vmatprep.subr.mxu0 0.0
    %1366 = vmatpush2.msra.mxu0 0.0
    %1367 = vmatprep.subr.mxu0 0.0
    %1368 = vmatpush2.msra.mxu0 0.0
    %1369 = vmatprep.subr.mxu0 0.0
    %1370 = vmatpush2.msra.mxu0 0.0
    %1371 = vmatprep.mubr.f32.mxu0 0.0
    %1372 = vmatmul.mubr.f32.gmra.mxu0 %v1305
    %v1373 = vpop.f32.mrf.mxu0
    %v1374 = vadd.f32 %v365, %v1373
    %v1375 = vpop.f32.mrf.mxu0
    %1376 = vdwg.mxu0
    %v1377 = vtanh.pop %v1374
    %1378 = vst [vmem:[#allocation2 + $0x28] sm:$0xff] %v1377
    %1379 = vmatprep.subr.mxu0 0.0
    %1380 = vmatpush1.msra.mxu0 %v123
    %1381 = vmatprep.subr.mxu0 0.0
    %1382 = vmatpush1.msra.mxu0 %v122
    %1383 = vmatprep.subr.mxu0 0.0
    %1384 = vmatpush1.msra.mxu0 %v121
    %1385 = vmatprep.subr.mxu0 0.0
    %1386 = vmatpush1.msra.mxu0 %v120
    %1387 = vmatprep.subr.mxu0 0.0
    %1388 = vmatpush1.msra.mxu0 %v119
    %1389 = vmatprep.subr.mxu0 0.0
    %1390 = vmatpush1.msra.mxu0 %v118
    %1391 = vmatprep.subr.mxu0 0.0
    %1392 = vmatpush1.msra.mxu0 %v117
    %1393 = vmatprep.subr.mxu0 0.0
    %1394 = vmatpush1.msra.mxu0 %v116
    %1395 = vmatprep.subr.mxu0 0.0
    %1396 = vmatpush1.msra.mxu0 %v115
    %1397 = vmatprep.subr.mxu0 0.0
    %1398 = vmatpush1.msra.mxu0 %v114
    %1399 = vmatprep.subr.mxu0 0.0
    %1400 = vmatpush1.msra.mxu0 %v113
    %1401 = vmatprep.subr.mxu0 0.0
    %1402 = vmatpush1.msra.mxu0 %v112
    %1403 = vmatprep.subr.mxu0 0.0
    %1404 = vmatpush1.msra.mxu0 %v111
    %1405 = vmatprep.subr.mxu0 0.0
    %1406 = vmatpush1.msra.mxu0 %v110
    %1407 = vmatprep.subr.mxu0 0.0
    %1408 = vmatpush1.msra.mxu0 %v109
    %1409 = vmatprep.subr.mxu0 0.0
    %1410 = vmatpush1.msra.mxu0 %v108
    %1411 = vmatprep.subr.mxu0 0.0
    %1412 = vmatpush2.msra.mxu0 0.0
    %1413 = vmatprep.subr.mxu0 0.0
    %1414 = vmatpush2.msra.mxu0 0.0
    %1415 = vmatprep.subr.mxu0 0.0
    %1416 = vmatpush2.msra.mxu0 0.0
    %1417 = vmatprep.subr.mxu0 0.0
    %1418 = vmatpush2.msra.mxu0 0.0
    %1419 = vmatprep.subr.mxu0 0.0
    %1420 = vmatpush2.msra.mxu0 0.0
    %1421 = vmatprep.subr.mxu0 0.0
    %1422 = vmatpush2.msra.mxu0 0.0
    %1423 = vmatprep.subr.mxu0 0.0
    %1424 = vmatpush2.msra.mxu0 0.0
    %1425 = vmatprep.subr.mxu0 0.0
    %1426 = vmatpush2.msra.mxu0 0.0
    %1427 = vmatprep.subr.mxu0 0.0
    %1428 = vmatpush2.msra.mxu0 0.0
    %1429 = vmatprep.subr.mxu0 0.0
    %1430 = vmatpush2.msra.mxu0 0.0
    %1431 = vmatprep.subr.mxu0 0.0
    %1432 = vmatpush2.msra.mxu0 0.0
    %1433 = vmatprep.subr.mxu0 0.0
    %1434 = vmatpush2.msra.mxu0 0.0
    %1435 = vmatprep.subr.mxu0 0.0
    %1436 = vmatpush2.msra.mxu0 0.0
    %1437 = vmatprep.subr.mxu0 0.0
    %1438 = vmatpush2.msra.mxu0 0.0
    %1439 = vmatprep.subr.mxu0 0.0
    %1440 = vmatpush2.msra.mxu0 0.0
    %1441 = vmatprep.subr.mxu0 0.0
    %1442 = vmatpush2.msra.mxu0 0.0
    %1443 = vmatprep.mubr.f32.mxu0 0.0
    %1444 = vmatmul.mubr.f32.gmra.mxu0 %v1377
    %v1445 = vpop.f32.mrf.mxu0
    %v1446 = vadd.f32 %v370, %v1445
    %v1447 = vpop.f32.mrf.mxu0
    %1448 = vdwg.mxu0
    %v1449 = vtanh.pop %v1446
    %1450 = vst [vmem:[#allocation2 + $0x30] sm:$0xff] %v1449
    %1451 = vmatprep.subr.mxu0 0.0
    %1452 = vmatpush1.msra.mxu0 %v123
    %1453 = vmatprep.subr.mxu0 0.0
    %1454 = vmatpush1.msra.mxu0 %v122
    %1455 = vmatprep.subr.mxu0 0.0
    %1456 = vmatpush1.msra.mxu0 %v121
    %1457 = vmatprep.subr.mxu0 0.0
    %1458 = vmatpush1.msra.mxu0 %v120
    %1459 = vmatprep.subr.mxu0 0.0
    %1460 = vmatpush1.msra.mxu0 %v119
    %1461 = vmatprep.subr.mxu0 0.0
    %1462 = vmatpush1.msra.mxu0 %v118
    %1463 = vmatprep.subr.mxu0 0.0
    %1464 = vmatpush1.msra.mxu0 %v117
    %1465 = vmatprep.subr.mxu0 0.0
    %1466 = vmatpush1.msra.mxu0 %v116
    %1467 = vmatprep.subr.mxu0 0.0
    %1468 = vmatpush1.msra.mxu0 %v115
    %1469 = vmatprep.subr.mxu0 0.0
    %1470 = vmatpush1.msra.mxu0 %v114
    %1471 = vmatprep.subr.mxu0 0.0
    %1472 = vmatpush1.msra.mxu0 %v113
    %1473 = vmatprep.subr.mxu0 0.0
    %1474 = vmatpush1.msra.mxu0 %v112
    %1475 = vmatprep.subr.mxu0 0.0
    %1476 = vmatpush1.msra.mxu0 %v111
    %1477 = vmatprep.subr.mxu0 0.0
    %1478 = vmatpush1.msra.mxu0 %v110
    %1479 = vmatprep.subr.mxu0 0.0
    %1480 = vmatpush1.msra.mxu0 %v109
    %1481 = vmatprep.subr.mxu0 0.0
    %1482 = vmatpush1.msra.mxu0 %v108
    %1483 = vmatprep.subr.mxu0 0.0
    %1484 = vmatpush2.msra.mxu0 0.0
    %1485 = vmatprep.subr.mxu0 0.0
    %1486 = vmatpush2.msra.mxu0 0.0
    %1487 = vmatprep.subr.mxu0 0.0
    %1488 = vmatpush2.msra.mxu0 0.0
    %1489 = vmatprep.subr.mxu0 0.0
    %1490 = vmatpush2.msra.mxu0 0.0
    %1491 = vmatprep.subr.mxu0 0.0
    %1492 = vmatpush2.msra.mxu0 0.0
    %1493 = vmatprep.subr.mxu0 0.0
    %1494 = vmatpush2.msra.mxu0 0.0
    %1495 = vmatprep.subr.mxu0 0.0
    %1496 = vmatpush2.msra.mxu0 0.0
    %1497 = vmatprep.subr.mxu0 0.0
    %1498 = vmatpush2.msra.mxu0 0.0
    %1499 = vmatprep.subr.mxu0 0.0
    %1500 = vmatpush2.msra.mxu0 0.0
    %1501 = vmatprep.subr.mxu0 0.0
    %1502 = vmatpush2.msra.mxu0 0.0
    %1503 = vmatprep.subr.mxu0 0.0
    %1504 = vmatpush2.msra.mxu0 0.0
    %1505 = vmatprep.subr.mxu0 0.0
    %1506 = vmatpush2.msra.mxu0 0.0
    %1507 = vmatprep.subr.mxu0 0.0
    %1508 = vmatpush2.msra.mxu0 0.0
    %1509 = vmatprep.subr.mxu0 0.0
    %1510 = vmatpush2.msra.mxu0 0.0
    %1511 = vmatprep.subr.mxu0 0.0
    %1512 = vmatpush2.msra.mxu0 0.0
    %1513 = vmatprep.subr.mxu0 0.0
    %1514 = vmatpush2.msra.mxu0 0.0
    %1515 = vmatprep.mubr.f32.mxu0 0.0
    %1516 = vmatmul.mubr.f32.gmra.mxu0 %v1449
    %v1517 = vpop.f32.mrf.mxu0
    %v1518 = vadd.f32 %v375, %v1517
    %v1519 = vpop.f32.mrf.mxu0
    %1520 = vdwg.mxu0
    %v1521 = vtanh.pop %v1518
    %1522 = vst [vmem:[#allocation2 + $0x38] sm:$0xff] %v1521
    %v1523 = vld [vmem:[#allocation2] sm:$0xff]
    %v1524 = vld [vmem:[#allocation2 + $0x8] sm:$0xff]
    %v1525 = vld [vmem:[#allocation2 + $0x10] sm:$0xff]
    %v1526 = vld [vmem:[#allocation2 + $0x18] sm:$0xff]
    %v1527 = vld [vmem:[#allocation2 + $0x20] sm:$0xff]
    %v1528 = vld [vmem:[#allocation2 + $0x28] sm:$0xff]
    %v1529 = vld [vmem:[#allocation2 + $0x30] sm:$0xff]
    %v1530 = vld [vmem:[#allocation2 + $0x38] sm:$0xff]
    %v1531 = vlaneseq
    %v1532 = vshrl.u32 %v1531, 7
    %v1533 = vsub.s32 0, %v1532
    %v1534 = vrot.slane %v143, %v1533
    %1535 = vmatprep.subr.mxu0 0.0
    %1536 = vmatpush1.msra.mxu0 %v140
    %1537 = vmatprep.subr.mxu0 0.0
    %1538 = vmatpush1.msra.mxu0 %v139
    %1539 = vmatprep.subr.mxu0 0.0
    %1540 = vmatpush1.msra.mxu0 %v138
    %1541 = vmatprep.subr.mxu0 0.0
    %1542 = vmatpush1.msra.mxu0 %v137
    %1543 = vmatprep.subr.mxu0 0.0
    %1544 = vmatpush1.msra.mxu0 %v136
    %1545 = vmatprep.subr.mxu0 0.0
    %1546 = vmatpush1.msra.mxu0 %v135
    %1547 = vmatprep.subr.mxu0 0.0
    %1548 = vmatpush1.msra.mxu0 %v134
    %1549 = vmatprep.subr.mxu0 0.0
    %1550 = vmatpush1.msra.mxu0 %v133
    %1551 = vmatprep.subr.mxu0 0.0
    %1552 = vmatpush1.msra.mxu0 %v132
    %1553 = vmatprep.subr.mxu0 0.0
    %1554 = vmatpush1.msra.mxu0 %v131
    %1555 = vmatprep.subr.mxu0 0.0
    %1556 = vmatpush1.msra.mxu0 %v130
    %1557 = vmatprep.subr.mxu0 0.0
    %1558 = vmatpush1.msra.mxu0 %v129
    %1559 = vmatprep.subr.mxu0 0.0
    %1560 = vmatpush1.msra.mxu0 %v128
    %1561 = vmatprep.subr.mxu0 0.0
    %1562 = vmatpush1.msra.mxu0 %v127
    %1563 = vmatprep.subr.mxu0 0.0
    %1564 = vmatpush1.msra.mxu0 %v126
    %1565 = vmatprep.subr.mxu0 0.0
    %1566 = vmatpush1.msra.mxu0 %v125
    %1567 = vmatprep.subr.mxu0 0.0
    %1568 = vmatpush2.msra.mxu0 0.0
    %1569 = vmatprep.subr.mxu0 0.0
    %1570 = vmatpush2.msra.mxu0 0.0
    %1571 = vmatprep.subr.mxu0 0.0
    %1572 = vmatpush2.msra.mxu0 0.0
    %1573 = vmatprep.subr.mxu0 0.0
    %1574 = vmatpush2.msra.mxu0 0.0
    %1575 = vmatprep.subr.mxu0 0.0
    %1576 = vmatpush2.msra.mxu0 0.0
    %1577 = vmatprep.subr.mxu0 0.0
    %1578 = vmatpush2.msra.mxu0 0.0
    %1579 = vmatprep.subr.mxu0 0.0
    %1580 = vmatpush2.msra.mxu0 0.0
    %1581 = vmatprep.subr.mxu0 0.0
    %1582 = vmatpush2.msra.mxu0 0.0
    %1583 = vmatprep.subr.mxu0 0.0
    %1584 = vmatpush2.msra.mxu0 0.0
    %1585 = vmatprep.subr.mxu0 0.0
    %1586 = vmatpush2.msra.mxu0 0.0
    %1587 = vmatprep.subr.mxu0 0.0
    %1588 = vmatpush2.msra.mxu0 0.0
    %1589 = vmatprep.subr.mxu0 0.0
    %1590 = vmatpush2.msra.mxu0 0.0
    %1591 = vmatprep.subr.mxu0 0.0
    %1592 = vmatpush2.msra.mxu0 0.0
    %1593 = vmatprep.subr.mxu0 0.0
    %1594 = vmatpush2.msra.mxu0 0.0
    %1595 = vmatprep.subr.mxu0 0.0
    %1596 = vmatpush2.msra.mxu0 0.0
    %1597 = vmatprep.subr.mxu0 0.0
    %1598 = vmatpush2.msra.mxu0 0.0
    %1599 = vmatprep.mubr.f32.mxu0 0.0
    %1600 = vmatmul.mubr.f32.gmra.mxu0 %v1523
    %v1601 = vpop.f32.mrf.mxu0
    %v1602 = vadd.f32 %v1534, %v1601
    %v1603 = vpop.f32.mrf.mxu0
    %1604 = vmatprep.mubr.f32.mxu0 0.0
    %1605 = vmatmul.mubr.f32.gmra.mxu0 %v1524
    %v1606 = vpop.f32.mrf.mxu0
    %v1607 = vadd.f32 %v1534, %v1606
    %v1608 = vpop.f32.mrf.mxu0
    %1609 = vmatprep.mubr.f32.mxu0 0.0
    %1610 = vmatmul.mubr.f32.gmra.mxu0 %v1525
    %v1611 = vpop.f32.mrf.mxu0
    %v1612 = vadd.f32 %v1534, %v1611
    %v1613 = vpop.f32.mrf.mxu0
    %1614 = vmatprep.mubr.f32.mxu0 0.0
    %1615 = vmatmul.mubr.f32.gmra.mxu0 %v1526
    %v1616 = vpop.f32.mrf.mxu0
    %v1617 = vadd.f32 %v1534, %v1616
    %v1618 = vpop.f32.mrf.mxu0
    %1619 = vmatprep.mubr.f32.mxu0 0.0
    %1620 = vmatmul.mubr.f32.gmra.mxu0 %v1527
    %v1621 = vpop.f32.mrf.mxu0
    %v1622 = vadd.f32 %v1534, %v1621
    %v1623 = vpop.f32.mrf.mxu0
    %1624 = vmatprep.mubr.f32.mxu0 0.0
    %1625 = vmatmul.mubr.f32.gmra.mxu0 %v1528
    %v1626 = vpop.f32.mrf.mxu0
    %v1627 = vadd.f32 %v1534, %v1626
    %v1628 = vpop.f32.mrf.mxu0
    %1629 = vmatprep.mubr.f32.mxu0 0.0
    %1630 = vmatmul.mubr.f32.gmra.mxu0 %v1529
    %v1631 = vpop.f32.mrf.mxu0
    %v1632 = vadd.f32 %v1534, %v1631
    %v1633 = vpop.f32.mrf.mxu0
    %1634 = vmatprep.mubr.f32.mxu0 0.0
    %1635 = vmatmul.mubr.f32.gmra.mxu0 %v1530
    %v1636 = vpop.f32.mrf.mxu0
    %v1637 = vadd.f32 %v1534, %v1636
    %v1638 = vpop.f32.mrf.mxu0
    %1639 = vdwg.mxu0
    %1640 = vst [vmem:[#allocation9] sm:$0xff] %v1602
    %1641 = vst [vmem:[#allocation9 + $0x8] sm:$0xff] %v1607
    %1642 = vst [vmem:[#allocation9 + $0x10] sm:$0xff] %v1612
    %1643 = vst [vmem:[#allocation9 + $0x18] sm:$0xff] %v1617
    %1644 = vst [vmem:[#allocation9 + $0x20] sm:$0xff] %v1622
    %1645 = vst [vmem:[#allocation9 + $0x28] sm:$0xff] %v1627
    %1646 = vst [vmem:[#allocation9 + $0x30] sm:$0xff] %v1632
    %1647 = vst [vmem:[#allocation9 + $0x38] sm:$0xff] %v1637
    // Predicated region
    $region30: #{tpu_custom_call.1} parent=1 // pred_check
      _
    $region31: #{tpu_custom_call.1} parent=1 // pred_check_branch
      %1649 = sbr.rel (0) target = $region33
    $region32: #{tpu_custom_call.1} parent=1 // pred_region
      %s1651 = ssub.s32 1024, 1024
      %1652 = vsyncadd [#allocation5], %s1651
      %s1653 = sshll.u32 [#allocation9], 4
      %s1654 = int_to_ptr.vmem [resolvable:$true] %s1653
      %1659 = dma.vmem_to_hbm [thread:$0]  %s1654, 1024, %s4, [#allocation5], 128, 128, 8
    $region33: #{tpu_custom_call.1} parent=1 // pred_fallthru
      _
    // Predicated region
    $region34: #{tpu_custom_call.1} parent=1 // pred_check
      _
    $region35: #{tpu_custom_call.1} parent=1 // pred_check_branch
      %1661 = sbr.rel (0) target = $region37
    $region36: #{tpu_custom_call.1} parent=1 // pred_region
      %1662 = dma.done [#allocation5], 1024
    $region37: #{tpu_custom_call.1} parent=1 // pred_fallthru
      _
    %1663 = vsyncpa [#allocation4], 1
    %1664 = vsyncpa [#allocation7], 1
    %1665 = vsyncpa [#allocation5], 1

</llo_original>
